<compile_context>
chip_gen: v5e
topology: v5e:2x2
jax: 0.10.0
libtpu: 0.0.40
codegen_flags: <defaults>
</compile_context>

<pallas_src>
import functools

import jax
import jax.numpy as jnp
from jax.experimental import pallas as pl
from jax.experimental.pallas import tpu as pltpu

EPS = 1e-5


def _bn_train(y2d, gamma, beta, rows):
    """Training-mode BN on (rows, C): biased variance over rows, eps=1e-5."""
    inv_n = 1.0 / rows
    mean = jnp.sum(y2d, axis=0, keepdims=True) * inv_n
    centered = y2d - mean
    var = jnp.sum(centered * centered, axis=0, keepdims=True) * inv_n
    return centered * jax.lax.rsqrt(var + EPS) * gamma + beta


def residual_kernel(xcol1_ref, xs_ref, w1_ref, b1_ref, w2_ref, b2_ref,
                    w3_ref, b3_ref, g1_ref, bt1_ref, g2_ref, bt2_ref,
                    o_ref, ypad_ref, *, use_1x1conv):
    """Fully fused residual block.

    xcol1_ref: (N, Ho, Wo, 9*Cin)  strided im2col patches for conv1
    xs_ref   : (N, Ho, Wo, Cs)     strided input for the skip path
    w1_ref   : (9*Cin, Cout)       w2_ref: (9*Cout, Cout)   w3_ref: (Cs, Cout)
    b*/g*/bt*: (1, Cout)
    o_ref    : (N, Ho, Wo, Cout)
    ypad_ref : VMEM scratch (N, Ho+2, Wo+2, Cout) halo buffer for conv2
    """
    N, Ho, Wo, Cout = o_ref.shape
    rows = N * Ho * Wo
    k1 = xcol1_ref.shape[-1]                       # 9 * Cin

    # ---- conv1: single im2col GEMM (stride already applied to the gather) ----
    xcol = xcol1_ref[...].astype(jnp.float32).reshape(rows, k1)
    y1 = jnp.dot(xcol, w1_ref[...], preferred_element_type=jnp.float32)
    y1 = y1 + b1_ref[...]

    # ---- bn1 (batch stats computed in-register) + relu ----
    a1 = jnp.maximum(_bn_train(y1, g1_ref[...], bt1_ref[...], rows), 0.0)

    # ---- conv2: 3x3 / pad 1 / stride 1, halo kept in VMEM scratch ----
    ypad_ref[...] = jnp.zeros_like(ypad_ref)
    ypad_ref[:, 1:Ho + 1, 1:Wo + 1, :] = a1.reshape(N, Ho, Wo, Cout)
    taps = []
    for kh in range(3):
        for kw in range(3):
            t = ypad_ref[:, kh:kh + Ho, kw:kw + Wo, :]
            taps.append(t.reshape(rows, Cout))
    patch2 = jnp.concatenate(taps, axis=1)          # (rows, 9*Cout)
    y2 = jnp.dot(patch2, w2_ref[...], preferred_element_type=jnp.float32)
    y2 = y2 + b2_ref[...]

    # ---- skip path: fused 1x1 conv (or identity) ----
    xs = xs_ref[...].astype(jnp.float32).reshape(rows, xs_ref.shape[-1])
    if use_1x1conv:
        skip = jnp.dot(xs, w3_ref[...], preferred_element_type=jnp.float32)
        skip = skip + b3_ref[...]
    else:
        skip = xs

    # ---- bn2 + residual add + relu ----
    out = jnp.maximum(_bn_train(y2, g2_ref[...], bt2_ref[...], rows) + skip, 0.0)
    o_ref[...] = out.reshape(N, Ho, Wo, Cout).astype(o_ref.dtype)


@functools.partial(jax.jit, static_argnames=("use_1x1conv", "stride"))
def residual_forward(x_nchw, params, use_1x1conv, stride):
    x = jnp.transpose(x_nchw, (0, 2, 3, 1))         # NCHW -> NHWC (glue)
    N, H, W, Cin = x.shape
    Cout = params["w1"].shape[0]
    Ho = (H - 1) // stride + 1
    Wo = (W - 1) // stride + 1

    # Strided im2col gather for conv1 done once in XLA on the tiny input:
    # applies the stride BEFORE the GEMM (1/s^2 of the stride-1 work).
    xp = jnp.pad(x, ((0, 0), (1, 1), (1, 1), (0, 0)))
    taps = []
    for kh in range(3):
        for kw in range(3):
            taps.append(xp[:, kh:kh + stride * (Ho - 1) + 1:stride,
                            kw:kw + stride * (Wo - 1) + 1:stride, :])
    xcol1 = jnp.concatenate(taps, axis=-1)           # (N, Ho, Wo, 9*Cin)

    # OIHW -> im2col weight matrices, contraction order (kh, kw, cin)
    w1col = jnp.transpose(params["w1"], (2, 3, 1, 0)).reshape(9 * Cin, Cout)
    w2col = jnp.transpose(params["w2"], (2, 3, 1, 0)).reshape(9 * Cout, Cout)

    if use_1x1conv:
        xs = x[:, 0:stride * (Ho - 1) + 1:stride,
                  0:stride * (Wo - 1) + 1:stride, :]          # (N, Ho, Wo, Cin)
        w3m = jnp.transpose(params["w3"], (2, 3, 1, 0))[0, 0]  # (Cin, Cout)
        b3v = params["b3"].reshape(1, Cout)
    else:
        xs = x                    # identity skip (stride == 1, Cin == Cout)
        w3m = jnp.zeros((Cin, Cout), x.dtype)                  # unused
        b3v = jnp.zeros((1, Cout), x.dtype)                    # unused

    def row(v):
        return v.reshape(1, Cout)

    out_nhwc = pl.pallas_call(
        functools.partial(residual_kernel, use_1x1conv=use_1x1conv),
        out_shape=jax.ShapeDtypeStruct((N, Ho, Wo, Cout), x.dtype),
        in_specs=[
            pl.BlockSpec(xcol1.shape, lambda: (0, 0, 0, 0)),
            pl.BlockSpec(xs.shape, lambda: (0, 0, 0, 0)),
            pl.BlockSpec(w1col.shape, lambda: (0, 0)),
            pl.BlockSpec((1, Cout), lambda: (0, 0)),
            pl.BlockSpec(w2col.shape, lambda: (0, 0)),
            pl.BlockSpec((1, Cout), lambda: (0, 0)),
            pl.BlockSpec(w3m.shape, lambda: (0, 0)),
            pl.BlockSpec((1, Cout), lambda: (0, 0)),
            pl.BlockSpec((1, Cout), lambda: (0, 0)),
            pl.BlockSpec((1, Cout), lambda: (0, 0)),
            pl.BlockSpec((1, Cout), lambda: (0, 0)),
            pl.BlockSpec((1, Cout), lambda: (0, 0)),
        ],
        out_specs=pl.BlockSpec((N, Ho, Wo, Cout), lambda: (0, 0, 0, 0)),
        scratch_shapes=[pltpu.VMEM((N, Ho + 2, Wo + 2, Cout), jnp.float32)],
    )(xcol1, xs, w1col, row(params["b1"]), w2col, row(params["b2"]),
      w3m, b3v, row(params["g1"]), row(params["bt1"]),
      row(params["g2"]), row(params["bt2"]))

    return jnp.transpose(out_nhwc, (0, 3, 1, 2))     # NHWC -> NCHW (glue)


# Pure-JAX reference (correctness check only)
def residual_reference(x_nchw, params, use_1x1conv, stride):
    x = jnp.transpose(x_nchw, (0, 2, 3, 1))
    dn = ("NHWC", "HWIO", "NHWC")

    def conv(x, w_oihw, b, pad, s):
        w = jnp.transpose(w_oihw, (2, 3, 1, 0))
        y = jax.lax.conv_general_dilated(x, w, (s, s), [(pad, pad), (pad, pad)],
                                         dimension_numbers=dn)
        return y + b[None, None, None, :]

    def bn(x, g, bt):
        m = x.mean((0, 1, 2), keepdims=True)
        v = ((x - m) ** 2).mean((0, 1, 2), keepdims=True)
        return (x - m) * jax.lax.rsqrt(v + EPS) * g + bt

    y = jax.nn.relu(bn(conv(x, params["w1"], params["b1"], 1, stride),
                       params["g1"], params["bt1"]))
    y = bn(conv(y, params["w2"], params["b2"], 1, 1), params["g2"], params["bt2"])
    skip = conv(x, params["w3"], params["b3"], 0, stride) if use_1x1conv else x
    return jnp.transpose(jax.nn.relu(y + skip), (0, 3, 1, 2))


if __name__ == "__main__":
    def make_params(key, cin, cout, use_1x1):
        ks = jax.random.split(key, 10)
        p = {
            "w1": 0.1 * jax.random.normal(ks[0], (cout, cin, 3, 3), jnp.float32),
            "b1": 0.1 * jax.random.normal(ks[1], (cout,), jnp.float32),
            "w2": 0.1 * jax.random.normal(ks[2], (cout, cout, 3, 3), jnp.float32),
            "b2": 0.1 * jax.random.normal(ks[3], (cout,), jnp.float32),
            "g1": 1.0 + 0.1 * jax.random.normal(ks[6], (cout,), jnp.float32),
            "bt1": 0.1 * jax.random.normal(ks[7], (cout,), jnp.float32),
            "g2": 1.0 + 0.1 * jax.random.normal(ks[8], (cout,), jnp.float32),
            "bt2": 0.1 * jax.random.normal(ks[9], (cout,), jnp.float32),
        }
        if use_1x1:
            p["w3"] = 0.1 * jax.random.normal(ks[4], (cout, cin, 1, 1), jnp.float32)
            p["b3"] = 0.1 * jax.random.normal(ks[5], (cout,), jnp.float32)
        return p

    key = jax.random.PRNGKey(0)
    k1, k2, kx1, kx2 = jax.random.split(key, 4)

    # Config A: Residual(4, 8, use_1x1conv=True, stride=2) on x (2, 4, 16, 16)
    pA = make_params(k1, 4, 8, True)
    xA = jax.random.normal(kx1, (2, 4, 16, 16), jnp.float32)
    outA = jax.block_until_ready(residual_forward(xA, pA, True, 2))
    refA = residual_reference(xA, pA, True, 2)
    assert outA.shape == (2, 8, 8, 8), outA.shape
    assert jnp.allclose(outA, refA, atol=1e-4, rtol=1e-4), \
        float(jnp.max(jnp.abs(outA - refA)))

    # Config B: Residual(8, 8, use_1x1conv=False, stride=1) on x (2, 8, 8, 8)
    pB = make_params(k2, 8, 8, False)
    xB = jax.random.normal(kx2, (2, 8, 8, 8), jnp.float32)
    outB = jax.block_until_ready(residual_forward(xB, pB, False, 1))
    refB = residual_reference(xB, pB, False, 1)
    assert outB.shape == (2, 8, 8, 8), outB.shape
    assert jnp.allclose(outB, refB, atol=1e-4, rtol=1e-4), \
        float(jnp.max(jnp.abs(outB - refB)))

    print("KERNEL_OK")
</pallas_src>

<mosaic_0001>
module attributes {stable_mosaic.version = 11 : i64} {
  func.func @residual_kernel(%arg0: memref<2x8x8x36xf32, #tpu.memory_space<vmem>>, %arg1: memref<2x8x8x4xf32, #tpu.memory_space<vmem>>, %arg2: memref<36x8xf32, #tpu.memory_space<vmem>>, %arg3: memref<1x8xf32, #tpu.memory_space<vmem>>, %arg4: memref<72x8xf32, #tpu.memory_space<vmem>>, %arg5: memref<1x8xf32, #tpu.memory_space<vmem>>, %arg6: memref<4x8xf32, #tpu.memory_space<vmem>>, %arg7: memref<1x8xf32, #tpu.memory_space<vmem>>, %arg8: memref<1x8xf32, #tpu.memory_space<vmem>>, %arg9: memref<1x8xf32, #tpu.memory_space<vmem>>, %arg10: memref<1x8xf32, #tpu.memory_space<vmem>>, %arg11: memref<1x8xf32, #tpu.memory_space<vmem>>, %arg12: memref<2x8x8x8xf32, #tpu.memory_space<vmem>>, %arg13: memref<2x10x10x8xf32, #tpu.memory_space<vmem>>) attributes {dimension_semantics = [], scalar_prefetch = 0 : i64, scratch_operands = 1 : i64, tpu.core_type = #tpu.core_type<tc>} {
    %c0 = arith.constant 0 : index
    %c0_0 = arith.constant 0 : index
    %c0_1 = arith.constant 0 : index
    %c0_2 = arith.constant 0 : index
    %0 = vector.load %arg0[%c0, %c0_0, %c0_1, %c0_2] : memref<2x8x8x36xf32, #tpu.memory_space<vmem>>, vector<2x8x8x36xf32>
    %1 = vector.shape_cast %0 : vector<2x8x8x36xf32> to vector<128x36xf32>
    %c0_3 = arith.constant 0 : index
    %c0_4 = arith.constant 0 : index
    %2 = vector.load %arg2[%c0_3, %c0_4] : memref<36x8xf32, #tpu.memory_space<vmem>>, vector<36x8xf32>
    %cst = arith.constant dense<0.000000e+00> : vector<128x8xf32>
    %3 = tpu.matmul %1, %2, %cst {dimension_numbers = #tpu.dot_dimension_numbers<[1], [0], [0], [1], [0, 0, 1, 1], [], []>} : vector<128x36xf32>, vector<36x8xf32>, vector<128x8xf32> -> vector<128x8xf32>
    %c0_5 = arith.constant 0 : index
    %c0_6 = arith.constant 0 : index
    %4 = vector.load %arg3[%c0_5, %c0_6] : memref<1x8xf32, #tpu.memory_space<vmem>>, vector<1x8xf32>
    %5 = vector.broadcast %4 : vector<1x8xf32> to vector<128x8xf32>
    %6 = arith.addf %3, %5 : vector<128x8xf32>
    %c0_7 = arith.constant 0 : index
    %c0_8 = arith.constant 0 : index
    %7 = vector.load %arg8[%c0_7, %c0_8] : memref<1x8xf32, #tpu.memory_space<vmem>>, vector<1x8xf32>
    %c0_9 = arith.constant 0 : index
    %c0_10 = arith.constant 0 : index
    %8 = vector.load %arg9[%c0_9, %c0_10] : memref<1x8xf32, #tpu.memory_space<vmem>>, vector<1x8xf32>
    %cst_11 = arith.constant dense<0.000000e+00> : vector<8xf32>
    %9 = vector.multi_reduction <add>, %6, %cst_11 [0] : vector<128x8xf32> to vector<8xf32>
    %10 = vector.shape_cast %9 : vector<8xf32> to vector<1x8xf32>
    %cst_12 = arith.constant 7.812500e-03 : f32
    %11 = vector.broadcast %cst_12 : f32 to vector<1x8xf32>
    %12 = arith.mulf %10, %11 : vector<1x8xf32>
    %13 = vector.broadcast %12 : vector<1x8xf32> to vector<128x8xf32>
    %14 = arith.subf %6, %13 : vector<128x8xf32>
    %15 = arith.mulf %14, %14 : vector<128x8xf32>
    %cst_13 = arith.constant dense<0.000000e+00> : vector<8xf32>
    %16 = vector.multi_reduction <add>, %15, %cst_13 [0] : vector<128x8xf32> to vector<8xf32>
    %17 = vector.shape_cast %16 : vector<8xf32> to vector<1x8xf32>
    %cst_14 = arith.constant 7.812500e-03 : f32
    %18 = vector.broadcast %cst_14 : f32 to vector<1x8xf32>
    %19 = arith.mulf %17, %18 : vector<1x8xf32>
    %cst_15 = arith.constant 9.99999974E-6 : f32
    %20 = vector.broadcast %cst_15 : f32 to vector<1x8xf32>
    %21 = arith.addf %19, %20 : vector<1x8xf32>
    %22 = math.rsqrt %21 : vector<1x8xf32>
    %23 = vector.broadcast %22 : vector<1x8xf32> to vector<128x8xf32>
    %24 = arith.mulf %14, %23 : vector<128x8xf32>
    %25 = vector.broadcast %7 : vector<1x8xf32> to vector<128x8xf32>
    %26 = arith.mulf %24, %25 : vector<128x8xf32>
    %27 = vector.broadcast %8 : vector<1x8xf32> to vector<128x8xf32>
    %28 = arith.addf %26, %27 : vector<128x8xf32>
    %cst_16 = arith.constant 0.000000e+00 : f32
    %29 = vector.broadcast %cst_16 : f32 to vector<128x8xf32>
    %30 = arith.maximumf %28, %29 : vector<128x8xf32>
    %cst_17 = arith.constant 0.000000e+00 : f32
    %31 = vector.broadcast %cst_17 : f32 to vector<2x10x10x8xf32>
    %c0_18 = arith.constant 0 : index
    %c0_19 = arith.constant 0 : index
    %c0_20 = arith.constant 0 : index
    %c0_21 = arith.constant 0 : index
    %32 = vector.load %arg13[%c0_18, %c0_19, %c0_20, %c0_21] : memref<2x10x10x8xf32, #tpu.memory_space<vmem>>, vector<2x10x10x8xf32>
    tpu.vector_store %arg13[%c0_18, %c0_19, %c0_20, %c0_21], %31 {strides = array<i32>} : memref<2x10x10x8xf32, #tpu.memory_space<vmem>>, vector<2x10x10x8xf32>,
    %33 = vector.shape_cast %30 : vector<128x8xf32> to vector<2x8x8x8xf32>
    %c0_22 = arith.constant 0 : index
    %c1 = arith.constant 1 : index
    %c1_23 = arith.constant 1 : index
    %c0_24 = arith.constant 0 : index
    %34 = vector.load %arg13[%c0_22, %c1, %c1_23, %c0_24] : memref<2x10x10x8xf32, #tpu.memory_space<vmem>>, vector<2x8x8x8xf32>
    tpu.vector_store %arg13[%c0_22, %c1, %c1_23, %c0_24], %33 {strides = array<i32>} : memref<2x10x10x8xf32, #tpu.memory_space<vmem>>, vector<2x8x8x8xf32>,
    %c0_25 = arith.constant 0 : index
    %c0_26 = arith.constant 0 : index
    %c0_27 = arith.constant 0 : index
    %c0_28 = arith.constant 0 : index
    %35 = vector.load %arg13[%c0_25, %c0_26, %c0_27, %c0_28] : memref<2x10x10x8xf32, #tpu.memory_space<vmem>>, vector<2x8x8x8xf32>
    %36 = vector.shape_cast %35 : vector<2x8x8x8xf32> to vector<128x8xf32>
    %c0_29 = arith.constant 0 : index
    %c0_30 = arith.constant 0 : index
    %c1_31 = arith.constant 1 : index
    %c0_32 = arith.constant 0 : index
    %37 = vector.load %arg13[%c0_29, %c0_30, %c1_31, %c0_32] : memref<2x10x10x8xf32, #tpu.memory_space<vmem>>, vector<2x8x8x8xf32>
    %38 = vector.shape_cast %37 : vector<2x8x8x8xf32> to vector<128x8xf32>
    %c0_33 = arith.constant 0 : index
    %c0_34 = arith.constant 0 : index
    %c2 = arith.constant 2 : index
    %c0_35 = arith.constant 0 : index
    %39 = vector.load %arg13[%c0_33, %c0_34, %c2, %c0_35] : memref<2x10x10x8xf32, #tpu.memory_space<vmem>>, vector<2x8x8x8xf32>
    %40 = vector.shape_cast %39 : vector<2x8x8x8xf32> to vector<128x8xf32>
    %c0_36 = arith.constant 0 : index
    %c1_37 = arith.constant 1 : index
    %c0_38 = arith.constant 0 : index
    %c0_39 = arith.constant 0 : index
    %41 = vector.load %arg13[%c0_36, %c1_37, %c0_38, %c0_39] : memref<2x10x10x8xf32, #tpu.memory_space<vmem>>, vector<2x8x8x8xf32>
    %42 = vector.shape_cast %41 : vector<2x8x8x8xf32> to vector<128x8xf32>
    %c0_40 = arith.constant 0 : index
    %c1_41 = arith.constant 1 : index
    %c1_42 = arith.constant 1 : index
    %c0_43 = arith.constant 0 : index
    %43 = vector.load %arg13[%c0_40, %c1_41, %c1_42, %c0_43] : memref<2x10x10x8xf32, #tpu.memory_space<vmem>>, vector<2x8x8x8xf32>
    %44 = vector.shape_cast %43 : vector<2x8x8x8xf32> to vector<128x8xf32>
    %c0_44 = arith.constant 0 : index
    %c1_45 = arith.constant 1 : index
    %c2_46 = arith.constant 2 : index
    %c0_47 = arith.constant 0 : index
    %45 = vector.load %arg13[%c0_44, %c1_45, %c2_46, %c0_47] : memref<2x10x10x8xf32, #tpu.memory_space<vmem>>, vector<2x8x8x8xf32>
    %46 = vector.shape_cast %45 : vector<2x8x8x8xf32> to vector<128x8xf32>
    %c0_48 = arith.constant 0 : index
    %c2_49 = arith.constant 2 : index
    %c0_50 = arith.constant 0 : index
    %c0_51 = arith.constant 0 : index
    %47 = vector.load %arg13[%c0_48, %c2_49, %c0_50, %c0_51] : memref<2x10x10x8xf32, #tpu.memory_space<vmem>>, vector<2x8x8x8xf32>
    %48 = vector.shape_cast %47 : vector<2x8x8x8xf32> to vector<128x8xf32>
    %c0_52 = arith.constant 0 : index
    %c2_53 = arith.constant 2 : index
    %c1_54 = arith.constant 1 : index
    %c0_55 = arith.constant 0 : index
    %49 = vector.load %arg13[%c0_52, %c2_53, %c1_54, %c0_55] : memref<2x10x10x8xf32, #tpu.memory_space<vmem>>, vector<2x8x8x8xf32>
    %50 = vector.shape_cast %49 : vector<2x8x8x8xf32> to vector<128x8xf32>
    %c0_56 = arith.constant 0 : index
    %c2_57 = arith.constant 2 : index
    %c2_58 = arith.constant 2 : index
    %c0_59 = arith.constant 0 : index
    %51 = vector.load %arg13[%c0_56, %c2_57, %c2_58, %c0_59] : memref<2x10x10x8xf32, #tpu.memory_space<vmem>>, vector<2x8x8x8xf32>
    %52 = vector.shape_cast %51 : vector<2x8x8x8xf32> to vector<128x8xf32>
    %53 = tpu.concatenate %36, %38, %40, %42, %44, %46, %48, %50, %52 in 1 : vector<128x8xf32>, vector<128x8xf32>, vector<128x8xf32>, vector<128x8xf32>, vector<128x8xf32>, vector<128x8xf32>, vector<128x8xf32>, vector<128x8xf32>, vector<128x8xf32> -> vector<128x72xf32>
    %c0_60 = arith.constant 0 : index
    %c0_61 = arith.constant 0 : index
    %54 = vector.load %arg4[%c0_60, %c0_61] : memref<72x8xf32, #tpu.memory_space<vmem>>, vector<72x8xf32>
    %cst_62 = arith.constant dense<0.000000e+00> : vector<128x8xf32>
    %55 = tpu.matmul %53, %54, %cst_62 {dimension_numbers = #tpu.dot_dimension_numbers<[1], [0], [0], [1], [0, 0, 1, 1], [], []>} : vector<128x72xf32>, vector<72x8xf32>, vector<128x8xf32> -> vector<128x8xf32>
    %c0_63 = arith.constant 0 : index
    %c0_64 = arith.constant 0 : index
    %56 = vector.load %arg5[%c0_63, %c0_64] : memref<1x8xf32, #tpu.memory_space<vmem>>, vector<1x8xf32>
    %57 = vector.broadcast %56 : vector<1x8xf32> to vector<128x8xf32>
    %58 = arith.addf %55, %57 : vector<128x8xf32>
    %c0_65 = arith.constant 0 : index
    %c0_66 = arith.constant 0 : index
    %c0_67 = arith.constant 0 : index
    %c0_68 = arith.constant 0 : index
    %59 = vector.load %arg1[%c0_65, %c0_66, %c0_67, %c0_68] : memref<2x8x8x4xf32, #tpu.memory_space<vmem>>, vector<2x8x8x4xf32>
    %60 = vector.shape_cast %59 : vector<2x8x8x4xf32> to vector<128x4xf32>
    %c0_69 = arith.constant 0 : index
    %c0_70 = arith.constant 0 : index
    %61 = vector.load %arg6[%c0_69, %c0_70] : memref<4x8xf32, #tpu.memory_space<vmem>>, vector<4x8xf32>
    %cst_71 = arith.constant dense<0.000000e+00> : vector<128x8xf32>
    %62 = tpu.matmul %60, %61, %cst_71 {dimension_numbers = #tpu.dot_dimension_numbers<[1], [0], [0], [1], [0, 0, 1, 1], [], []>} : vector<128x4xf32>, vector<4x8xf32>, vector<128x8xf32> -> vector<128x8xf32>
    %c0_72 = arith.constant 0 : index
    %c0_73 = arith.constant 0 : index
    %63 = vector.load %arg7[%c0_72, %c0_73] : memref<1x8xf32, #tpu.memory_space<vmem>>, vector<1x8xf32>
    %64 = vector.broadcast %63 : vector<1x8xf32> to vector<128x8xf32>
    %65 = arith.addf %62, %64 : vector<128x8xf32>
    %c0_74 = arith.constant 0 : index
    %c0_75 = arith.constant 0 : index
    %66 = vector.load %arg10[%c0_74, %c0_75] : memref<1x8xf32, #tpu.memory_space<vmem>>, vector<1x8xf32>
    %c0_76 = arith.constant 0 : index
    %c0_77 = arith.constant 0 : index
    %67 = vector.load %arg11[%c0_76, %c0_77] : memref<1x8xf32, #tpu.memory_space<vmem>>, vector<1x8xf32>
    %cst_78 = arith.constant dense<0.000000e+00> : vector<8xf32>
    %68 = vector.multi_reduction <add>, %58, %cst_78 [0] : vector<128x8xf32> to vector<8xf32>
    %69 = vector.shape_cast %68 : vector<8xf32> to vector<1x8xf32>
    %cst_79 = arith.constant 7.812500e-03 : f32
    %70 = vector.broadcast %cst_79 : f32 to vector<1x8xf32>
    %71 = arith.mulf %69, %70 : vector<1x8xf32>
    %72 = vector.broadcast %71 : vector<1x8xf32> to vector<128x8xf32>
    %73 = arith.subf %58, %72 : vector<128x8xf32>
    %74 = arith.mulf %73, %73 : vector<128x8xf32>
    %cst_80 = arith.constant dense<0.000000e+00> : vector<8xf32>
    %75 = vector.multi_reduction <add>, %74, %cst_80 [0] : vector<128x8xf32> to vector<8xf32>
    %76 = vector.shape_cast %75 : vector<8xf32> to vector<1x8xf32>
    %cst_81 = arith.constant 7.812500e-03 : f32
    %77 = vector.broadcast %cst_81 : f32 to vector<1x8xf32>
    %78 = arith.mulf %76, %77 : vector<1x8xf32>
    %cst_82 = arith.constant 9.99999974E-6 : f32
    %79 = vector.broadcast %cst_82 : f32 to vector<1x8xf32>
    %80 = arith.addf %78, %79 : vector<1x8xf32>
    %81 = math.rsqrt %80 : vector<1x8xf32>
    %82 = vector.broadcast %81 : vector<1x8xf32> to vector<128x8xf32>
    %83 = arith.mulf %73, %82 : vector<128x8xf32>
    %84 = vector.broadcast %66 : vector<1x8xf32> to vector<128x8xf32>
    %85 = arith.mulf %83, %84 : vector<128x8xf32>
    %86 = vector.broadcast %67 : vector<1x8xf32> to vector<128x8xf32>
    %87 = arith.addf %85, %86 : vector<128x8xf32>
    %88 = arith.addf %87, %65 : vector<128x8xf32>
    %cst_83 = arith.constant 0.000000e+00 : f32
    %89 = vector.broadcast %cst_83 : f32 to vector<128x8xf32>
    %90 = arith.maximumf %88, %89 : vector<128x8xf32>
    %91 = vector.shape_cast %90 : vector<128x8xf32> to vector<2x8x8x8xf32>
    %c0_84 = arith.constant 0 : index
    %c0_85 = arith.constant 0 : index
    %c0_86 = arith.constant 0 : index
    %c0_87 = arith.constant 0 : index
    %92 = vector.load %arg12[%c0_84, %c0_85, %c0_86, %c0_87] : memref<2x8x8x8xf32, #tpu.memory_space<vmem>>, vector<2x8x8x8xf32>
    tpu.vector_store %arg12[%c0_84, %c0_85, %c0_86, %c0_87], %91 {strides = array<i32>} : memref<2x8x8x8xf32, #tpu.memory_space<vmem>>, vector<2x8x8x8xf32>,
    return
  }
}

</mosaic_0001>

<llo_original>
// kernel: residual_forward.1
$region0: #{residual_forward.1}
  #allocation0 [shape = 'u32[]', space=smem, size = 0x4, offset = 0x4, fixed_abs, tag = 'smem constant byte address 0x4 - core index']
  #allocation1 [shape = 'u32[72,128]{1,0:T(1,128)}', space=vmem, size = 0x9000, scoped, tag = 'internal scratch']
  #allocation2 [shape = 'f32[2,10,10,8]{3,2,1,0:T(8,128)}', space=vmem, size = 0x28000, scoped, tag = 'scratch operand']
  %s0 = inlined_call_operand.vmem [shape: f32[2,8,8,36], index: 0, kind: input, shape index: {}]
  %s1 = inlined_call_operand.vmem [shape: f32[2,8,8,4], index: 1, kind: input, shape index: {}]
  %s2 = inlined_call_operand.vmem [shape: f32[36,8], index: 2, kind: input, shape index: {}]
  %s3 = inlined_call_operand.vmem [shape: f32[1,8], index: 3, kind: input, shape index: {}]
  %s4 = inlined_call_operand.vmem [shape: f32[72,8], index: 4, kind: input, shape index: {}]
  %s5 = inlined_call_operand.vmem [shape: f32[1,8], index: 5, kind: input, shape index: {}]
  %s6 = inlined_call_operand.vmem [shape: f32[4,8], index: 6, kind: input, shape index: {}]
  %s7 = inlined_call_operand.vmem [shape: f32[1,8], index: 7, kind: input, shape index: {}]
  %s8 = inlined_call_operand.vmem [shape: f32[1,8], index: 8, kind: input, shape index: {}]
  %s9 = inlined_call_operand.vmem [shape: f32[1,8], index: 9, kind: input, shape index: {}]
  %s10 = inlined_call_operand.vmem [shape: f32[1,8], index: 10, kind: input, shape index: {}]
  %s11 = inlined_call_operand.vmem [shape: f32[1,8], index: 11, kind: input, shape index: {}]
  %s12 = inlined_call_operand.vmem [shape: f32[2,8,8,8], index: 12, kind: output, shape index: {}]
  %s13 = sld [smem:[#allocation0]]
  $region58: #{residual_forward.1} parent=0
    _
  %s15 = ssub.s32 1, %s13
  %s16 = scalar_select 0, %s15, %s13
  // Predicated region
  $region2: #{residual_forward.1} parent=0 // pred_check
    _
  $region3: #{residual_forward.1} parent=0 // pred_check_branch
    %18 = sbr.rel (0) target = $region5
  $region4: #{residual_forward.1} parent=0 // pred_region
    _
  $region5: #{residual_forward.1} parent=0 // pred_fallthru
    _
  // Predicated region
  $region6: #{residual_forward.1} parent=0 // pred_check
    _
  $region7: #{residual_forward.1} parent=0 // pred_check_branch
    %20 = sbr.rel (0) target = $region9
  $region8: #{residual_forward.1} parent=0 // pred_region
    _
  $region9: #{residual_forward.1} parent=0 // pred_fallthru
    _
  // Predicated region
  $region10: #{residual_forward.1} parent=0 // pred_check
    _
  $region11: #{residual_forward.1} parent=0 // pred_check_branch
    %22 = sbr.rel (0) target = $region13
  $region12: #{residual_forward.1} parent=0 // pred_region
    _
  $region13: #{residual_forward.1} parent=0 // pred_fallthru
    _
  // Predicated region
  $region14: #{residual_forward.1} parent=0 // pred_check
    _
  $region15: #{residual_forward.1} parent=0 // pred_check_branch
    %24 = sbr.rel (0) target = $region17
  $region16: #{residual_forward.1} parent=0 // pred_region
    _
  $region17: #{residual_forward.1} parent=0 // pred_fallthru
    _
  // Predicated region
  $region18: #{residual_forward.1} parent=0 // pred_check
    _
  $region19: #{residual_forward.1} parent=0 // pred_check_branch
    %26 = sbr.rel (0) target = $region21
  $region20: #{residual_forward.1} parent=0 // pred_region
    _
  $region21: #{residual_forward.1} parent=0 // pred_fallthru
    _
  // Predicated region
  $region22: #{residual_forward.1} parent=0 // pred_check
    _
  $region23: #{residual_forward.1} parent=0 // pred_check_branch
    %28 = sbr.rel (0) target = $region25
  $region24: #{residual_forward.1} parent=0 // pred_region
    _
  $region25: #{residual_forward.1} parent=0 // pred_fallthru
    _
  // Predicated region
  $region26: #{residual_forward.1} parent=0 // pred_check
    _
  $region27: #{residual_forward.1} parent=0 // pred_check_branch
    %30 = sbr.rel (0) target = $region29
  $region28: #{residual_forward.1} parent=0 // pred_region
    _
  $region29: #{residual_forward.1} parent=0 // pred_fallthru
    _
  // Predicated region
  $region30: #{residual_forward.1} parent=0 // pred_check
    _
  $region31: #{residual_forward.1} parent=0 // pred_check_branch
    %32 = sbr.rel (0) target = $region33
  $region32: #{residual_forward.1} parent=0 // pred_region
    _
  $region33: #{residual_forward.1} parent=0 // pred_fallthru
    _
  // Predicated region
  $region34: #{residual_forward.1} parent=0 // pred_check
    _
  $region35: #{residual_forward.1} parent=0 // pred_check_branch
    %34 = sbr.rel (0) target = $region37
  $region36: #{residual_forward.1} parent=0 // pred_region
    _
  $region37: #{residual_forward.1} parent=0 // pred_fallthru
    _
  // Predicated region
  $region38: #{residual_forward.1} parent=0 // pred_check
    _
  $region39: #{residual_forward.1} parent=0 // pred_check_branch
    %36 = sbr.rel (0) target = $region41
  $region40: #{residual_forward.1} parent=0 // pred_region
    _
  $region41: #{residual_forward.1} parent=0 // pred_fallthru
    _
  // Predicated region
  $region42: #{residual_forward.1} parent=0 // pred_check
    _
  $region43: #{residual_forward.1} parent=0 // pred_check_branch
    %38 = sbr.rel (0) target = $region45
  $region44: #{residual_forward.1} parent=0 // pred_region
    _
  $region45: #{residual_forward.1} parent=0 // pred_fallthru
    _
  // Predicated region
  $region46: #{residual_forward.1} parent=0 // pred_check
    _
  $region47: #{residual_forward.1} parent=0 // pred_check_branch
    %40 = sbr.rel (0) target = $region49
  $region48: #{residual_forward.1} parent=0 // pred_region
    _
  $region49: #{residual_forward.1} parent=0 // pred_fallthru
    _
  %v41 = vld [vmem:[%s0] sm:$0xff]
  %v42 = vld [vmem:[%s0 + $0x8] sm:$0xff]
  %v43 = vld [vmem:[%s0 + $0x10] sm:$0xff]
  %v44 = vld [vmem:[%s0 + $0x18] sm:$0xff]
  %v45 = vld [vmem:[%s0 + $0x20] sm:$0xff]
  %v46 = vld [vmem:[%s0 + $0x28] sm:$0xff]
  %v47 = vld [vmem:[%s0 + $0x30] sm:$0xff]
  %v48 = vld [vmem:[%s0 + $0x38] sm:$0xff]
  %v49 = vld [vmem:[%s0 + $0x40] sm:$0xff]
  %v50 = vld [vmem:[%s0 + $0x48] sm:$0xff]
  %v51 = vld [vmem:[%s0 + $0x50] sm:$0xff]
  %v52 = vld [vmem:[%s0 + $0x58] sm:$0xff]
  %v53 = vld [vmem:[%s0 + $0x60] sm:$0xff]
  %v54 = vld [vmem:[%s0 + $0x68] sm:$0xff]
  %v55 = vld [vmem:[%s0 + $0x70] sm:$0xff]
  %v56 = vld [vmem:[%s0 + $0x78] sm:$0xff]
  %v57 = vld [vmem:[%s2] sm:$0xff]
  %v58 = vld [vmem:[%s2 + $0x8] sm:$0xff]
  %v59 = vld [vmem:[%s2 + $0x10] sm:$0xff]
  %v60 = vld [vmem:[%s2 + $0x18] sm:$0xff]
  %v61 = vld [vmem:[%s2 + $0x20] sm:$0xf]
  %v62 = vld [vmem:[%s3] sm:$0x1]
  %v64 = vperm.slane %v62, 0
  %vm66 = vcmask 293888
  %v68 = vsel %vm66, %v41, 0
  %v71 = vsel %vm66, %v42, 0
  %v74 = vsel %vm66, %v43, 0
  %v77 = vsel %vm66, %v44, 0
  %v80 = vsel %vm66, %v45, 0
  %v83 = vsel %vm66, %v46, 0
  %v86 = vsel %vm66, %v47, 0
  %v89 = vsel %vm66, %v48, 0
  %v92 = vsel %vm66, %v49, 0
  %v95 = vsel %vm66, %v50, 0
  %v98 = vsel %vm66, %v51, 0
  %v101 = vsel %vm66, %v52, 0
  %v104 = vsel %vm66, %v53, 0
  %v107 = vsel %vm66, %v54, 0
  %v110 = vsel %vm66, %v55, 0
  %v113 = vsel %vm66, %v56, 0
  %vm115 = vcmask 1043456
  %v117 = vsel %vm115, %v61, 0
  %119 = vmatpush.msra.mxu0 0.0
  %120 = vmatpush.msra.mxu0 0.0
  %121 = vmatpush.msra.mxu0 0.0
  %122 = vmatpush.msra.mxu0 0.0
  %123 = vmatpush.msra.mxu0 0.0
  %124 = vmatpush.msra.mxu0 0.0
  %125 = vmatpush.msra.mxu0 0.0
  %126 = vmatpush.msra.mxu0 0.0
  %127 = vmatpush.msra.mxu0 0.0
  %128 = vmatpush.msra.mxu0 0.0
  %129 = vmatpush.msra.mxu0 0.0
  %130 = vmatpush.msra.mxu0 %v117
  %131 = vmatpush.msra.mxu0 %v60
  %132 = vmatpush.msra.mxu0 %v59
  %133 = vmatpush.msra.mxu0 %v58
  %134 = vmatpush.msra.mxu0 %v57
  %135 = vmatmul.f32.gmra.mxu0 %v68
  %v136 = vpop.f32.mrf.mxu0
  %v137 = vadd.f32 %v64, %v136
  %138 = vmatmul.f32.gmra.mxu0 %v71
  %v139 = vpop.f32.mrf.mxu0
  %v140 = vadd.f32 %v64, %v139
  %141 = vmatmul.f32.gmra.mxu0 %v74
  %v142 = vpop.f32.mrf.mxu0
  %v143 = vadd.f32 %v64, %v142
  %144 = vmatmul.f32.gmra.mxu0 %v77
  %v145 = vpop.f32.mrf.mxu0
  %v146 = vadd.f32 %v64, %v145
  %147 = vmatmul.f32.gmra.mxu0 %v80
  %v148 = vpop.f32.mrf.mxu0
  %v149 = vadd.f32 %v64, %v148
  %150 = vmatmul.f32.gmra.mxu0 %v83
  %v151 = vpop.f32.mrf.mxu0
  %v152 = vadd.f32 %v64, %v151
  %153 = vmatmul.f32.gmra.mxu0 %v86
  %v154 = vpop.f32.mrf.mxu0
  %v155 = vadd.f32 %v64, %v154
  %156 = vmatmul.f32.gmra.mxu0 %v89
  %v157 = vpop.f32.mrf.mxu0
  %v158 = vadd.f32 %v64, %v157
  %159 = vmatmul.f32.gmra.mxu0 %v92
  %v160 = vpop.f32.mrf.mxu0
  %v161 = vadd.f32 %v64, %v160
  %162 = vmatmul.f32.gmra.mxu0 %v95
  %v163 = vpop.f32.mrf.mxu0
  %v164 = vadd.f32 %v64, %v163
  %165 = vmatmul.f32.gmra.mxu0 %v98
  %v166 = vpop.f32.mrf.mxu0
  %v167 = vadd.f32 %v64, %v166
  %168 = vmatmul.f32.gmra.mxu0 %v101
  %v169 = vpop.f32.mrf.mxu0
  %v170 = vadd.f32 %v64, %v169
  %171 = vmatmul.f32.gmra.mxu0 %v104
  %v172 = vpop.f32.mrf.mxu0
  %v173 = vadd.f32 %v64, %v172
  %174 = vmatmul.f32.gmra.mxu0 %v107
  %v175 = vpop.f32.mrf.mxu0
  %v176 = vadd.f32 %v64, %v175
  %177 = vmatmul.f32.gmra.mxu0 %v110
  %v178 = vpop.f32.mrf.mxu0
  %v179 = vadd.f32 %v64, %v178
  %180 = vmatmul.f32.gmra.mxu0 %v113
  %v181 = vpop.f32.mrf.mxu0
  %v182 = vadd.f32 %v64, %v181
  %183 = vdwg.mxu0
  %v184 = vld [vmem:[%s8] sm:$0x1]
  %v185 = vld [vmem:[%s9] sm:$0x1]
  %vm186 = vcmask 64512
  %v187 = vsel %vm186, %v137, 0.0
  %v188 = vsel %vm186, %v140, 0.0
  %v189 = vadd.f32 %v187, %v188
  %v190 = vsel %vm186, %v143, 0.0
  %v191 = vadd.f32 %v189, %v190
  %v192 = vsel %vm186, %v146, 0.0
  %v193 = vadd.f32 %v191, %v192
  %v194 = vsel %vm186, %v149, 0.0
  %v195 = vadd.f32 %v193, %v194
  %v196 = vsel %vm186, %v152, 0.0
  %v197 = vadd.f32 %v195, %v196
  %v198 = vsel %vm186, %v155, 0.0
  %v199 = vadd.f32 %v197, %v198
  %v200 = vsel %vm186, %v158, 0.0
  %v201 = vadd.f32 %v199, %v200
  %v202 = vsel %vm186, %v161, 0.0
  %v203 = vadd.f32 %v201, %v202
  %v204 = vsel %vm186, %v164, 0.0
  %v205 = vadd.f32 %v203, %v204
  %v206 = vsel %vm186, %v167, 0.0
  %v207 = vadd.f32 %v205, %v206
  %v208 = vsel %vm186, %v170, 0.0
  %v209 = vadd.f32 %v207, %v208
  %v210 = vsel %vm186, %v173, 0.0
  %v211 = vadd.f32 %v209, %v210
  %v212 = vsel %vm186, %v176, 0.0
  %v213 = vadd.f32 %v211, %v212
  %v214 = vsel %vm186, %v179, 0.0
  %v215 = vadd.f32 %v213, %v214
  %v216 = vsel %vm186, %v182, 0.0
  %v217 = vadd.f32 %v215, %v216
  %v218 = vrot.slane %v217, 4
  %v219 = vadd.f32 %v217, %v218
  %v220 = vrot.slane %v219, 2
  %v221 = vadd.f32 %v219, %v220
  %v222 = vrot.slane %v221, 1
  %v223 = vadd.f32 %v221, %v222
  %v224 = vmul.f32 %v223, 0.0078125
  %v225 = vsub.f32 %v137, %v224
  %v226 = vsub.f32 %v140, %v224
  %v227 = vsub.f32 %v143, %v224
  %v228 = vsub.f32 %v146, %v224
  %v229 = vsub.f32 %v149, %v224
  %v230 = vsub.f32 %v152, %v224
  %v231 = vsub.f32 %v155, %v224
  %v232 = vsub.f32 %v158, %v224
  %v233 = vsub.f32 %v161, %v224
  %v234 = vsub.f32 %v164, %v224
  %v235 = vsub.f32 %v167, %v224
  %v236 = vsub.f32 %v170, %v224
  %v237 = vsub.f32 %v173, %v224
  %v238 = vsub.f32 %v176, %v224
  %v239 = vsub.f32 %v179, %v224
  %v240 = vsub.f32 %v182, %v224
  %v241 = vmul.f32 %v225, %v225
  %v242 = vmul.f32 %v226, %v226
  %v243 = vmul.f32 %v227, %v227
  %v244 = vmul.f32 %v228, %v228
  %v245 = vmul.f32 %v229, %v229
  %v246 = vmul.f32 %v230, %v230
  %v247 = vmul.f32 %v231, %v231
  %v248 = vmul.f32 %v232, %v232
  %v249 = vmul.f32 %v233, %v233
  %v250 = vmul.f32 %v234, %v234
  %v251 = vmul.f32 %v235, %v235
  %v252 = vmul.f32 %v236, %v236
  %v253 = vmul.f32 %v237, %v237
  %v254 = vmul.f32 %v238, %v238
  %v255 = vmul.f32 %v239, %v239
  %v256 = vmul.f32 %v240, %v240
  %v257 = vsel %vm186, %v241, 0.0
  %v258 = vsel %vm186, %v242, 0.0
  %v259 = vadd.f32 %v257, %v258
  %v260 = vsel %vm186, %v243, 0.0
  %v261 = vadd.f32 %v259, %v260
  %v262 = vsel %vm186, %v244, 0.0
  %v263 = vadd.f32 %v261, %v262
  %v264 = vsel %vm186, %v245, 0.0
  %v265 = vadd.f32 %v263, %v264
  %v266 = vsel %vm186, %v246, 0.0
  %v267 = vadd.f32 %v265, %v266
  %v268 = vsel %vm186, %v247, 0.0
  %v269 = vadd.f32 %v267, %v268
  %v270 = vsel %vm186, %v248, 0.0
  %v271 = vadd.f32 %v269, %v270
  %v272 = vsel %vm186, %v249, 0.0
  %v273 = vadd.f32 %v271, %v272
  %v274 = vsel %vm186, %v250, 0.0
  %v275 = vadd.f32 %v273, %v274
  %v276 = vsel %vm186, %v251, 0.0
  %v277 = vadd.f32 %v275, %v276
  %v278 = vsel %vm186, %v252, 0.0
  %v279 = vadd.f32 %v277, %v278
  %v280 = vsel %vm186, %v253, 0.0
  %v281 = vadd.f32 %v279, %v280
  %v282 = vsel %vm186, %v254, 0.0
  %v283 = vadd.f32 %v281, %v282
  %v284 = vsel %vm186, %v255, 0.0
  %v285 = vadd.f32 %v283, %v284
  %v286 = vsel %vm186, %v256, 0.0
  %v287 = vadd.f32 %v285, %v286
  %v288 = vrot.slane %v287, 4
  %v289 = vadd.f32 %v287, %v288
  %v290 = vrot.slane %v289, 2
  %v291 = vadd.f32 %v289, %v290
  %v292 = vrot.slane %v291, 1
  %v293 = vadd.f32 %v291, %v292
  %v294 = vmul.f32 %v293, 0.0078125
  %v295 = vadd.f32 %v294, 1e-05
  %v296 = vrsqrt.pop %v295
  %v297 = vmul.f32 %v296, %v295
  %v298 = vmul.f32 %v297, %v296
  %v299 = vmul.f32 0.5, %v298
  %v300 = vsub.f32 1.5, %v299
  %v301 = vmul.f32 %v296, %v300
  %vm302 = vweird.f32 %v295
  %vm303 = vweird.f32 %v296
  %vm304 = vmor %vm302, %vm303
  %v305 = vsel %vm304, %v296, %v301
  %v306 = vmul.f32 %v225, %v305
  %v307 = vmul.f32 %v226, %v305
  %v308 = vmul.f32 %v227, %v305
  %v309 = vmul.f32 %v228, %v305
  %v310 = vmul.f32 %v229, %v305
  %v311 = vmul.f32 %v230, %v305
  %v312 = vmul.f32 %v231, %v305
  %v313 = vmul.f32 %v232, %v305
  %v314 = vmul.f32 %v233, %v305
  %v315 = vmul.f32 %v234, %v305
  %v316 = vmul.f32 %v235, %v305
  %v317 = vmul.f32 %v236, %v305
  %v318 = vmul.f32 %v237, %v305
  %v319 = vmul.f32 %v238, %v305
  %v320 = vmul.f32 %v239, %v305
  %v321 = vmul.f32 %v240, %v305
  %v323 = vperm.slane %v184, 0
  %v325 = vmul.f32 %v306, %v323
  %v326 = vmul.f32 %v307, %v323
  %v327 = vmul.f32 %v308, %v323
  %v328 = vmul.f32 %v309, %v323
  %v329 = vmul.f32 %v310, %v323
  %v330 = vmul.f32 %v311, %v323
  %v331 = vmul.f32 %v312, %v323
  %v332 = vmul.f32 %v313, %v323
  %v333 = vmul.f32 %v314, %v323
  %v334 = vmul.f32 %v315, %v323
  %v335 = vmul.f32 %v316, %v323
  %v336 = vmul.f32 %v317, %v323
  %v337 = vmul.f32 %v318, %v323
  %v338 = vmul.f32 %v319, %v323
  %v339 = vmul.f32 %v320, %v323
  %v340 = vmul.f32 %v321, %v323
  %v342 = vperm.slane %v185, 0
  %v344 = vadd.f32 %v325, %v342
  %v345 = vadd.f32 %v326, %v342
  %v346 = vadd.f32 %v327, %v342
  %v347 = vadd.f32 %v328, %v342
  %v348 = vadd.f32 %v329, %v342
  %v349 = vadd.f32 %v330, %v342
  %v350 = vadd.f32 %v331, %v342
  %v351 = vadd.f32 %v332, %v342
  %v352 = vadd.f32 %v333, %v342
  %v353 = vadd.f32 %v334, %v342
  %v354 = vadd.f32 %v335, %v342
  %v355 = vadd.f32 %v336, %v342
  %v356 = vadd.f32 %v337, %v342
  %v357 = vadd.f32 %v338, %v342
  %v358 = vadd.f32 %v339, %v342
  %v359 = vadd.f32 %v340, %v342
  %v360 = vmax.f32 %v344, 0.0
  %v361 = vmax.f32 %v345, 0.0
  %v362 = vmax.f32 %v346, 0.0
  %v363 = vmax.f32 %v347, 0.0
  %v364 = vmax.f32 %v348, 0.0
  %v365 = vmax.f32 %v349, 0.0
  %v366 = vmax.f32 %v350, 0.0
  %v367 = vmax.f32 %v351, 0.0
  %v368 = vmax.f32 %v352, 0.0
  %v369 = vmax.f32 %v353, 0.0
  %v370 = vmax.f32 %v354, 0.0
  %v371 = vmax.f32 %v355, 0.0
  %v372 = vmax.f32 %v356, 0.0
  %v373 = vmax.f32 %v357, 0.0
  %v374 = vmax.f32 %v358, 0.0
  %v375 = vmax.f32 %v359, 0.0
  %376 = vst.msk [vmem:[#allocation2] sm:$0xff] %vm186, 0.0
  %vm377 = vcmask 58368
  %378 = vst.msk [vmem:[#allocation2 + $0x8] sm:$0x3] %vm377, 0.0
  %379 = vst.msk [vmem:[#allocation2 + $0x10] sm:$0xff] %vm186, 0.0
  %380 = vst.msk [vmem:[#allocation2 + $0x18] sm:$0x3] %vm377, 0.0
  %381 = vst.msk [vmem:[#allocation2 + $0x20] sm:$0xff] %vm186, 0.0
  %382 = vst.msk [vmem:[#allocation2 + $0x28] sm:$0x3] %vm377, 0.0
  %383 = vst.msk [vmem:[#allocation2 + $0x30] sm:$0xff] %vm186, 0.0
  %384 = vst.msk [vmem:[#allocation2 + $0x38] sm:$0x3] %vm377, 0.0
  %385 = vst.msk [vmem:[#allocation2 + $0x40] sm:$0xff] %vm186, 0.0
  %386 = vst.msk [vmem:[#allocation2 + $0x48] sm:$0x3] %vm377, 0.0
  %387 = vst.msk [vmem:[#allocation2 + $0x50] sm:$0xff] %vm186, 0.0
  %388 = vst.msk [vmem:[#allocation2 + $0x58] sm:$0x3] %vm377, 0.0
  %389 = vst.msk [vmem:[#allocation2 + $0x60] sm:$0xff] %vm186, 0.0
  %390 = vst.msk [vmem:[#allocation2 + $0x68] sm:$0x3] %vm377, 0.0
  %391 = vst.msk [vmem:[#allocation2 + $0x70] sm:$0xff] %vm186, 0.0
  %392 = vst.msk [vmem:[#allocation2 + $0x78] sm:$0x3] %vm377, 0.0
  %393 = vst.msk [vmem:[#allocation2 + $0x80] sm:$0xff] %vm186, 0.0
  %394 = vst.msk [vmem:[#allocation2 + $0x88] sm:$0x3] %vm377, 0.0
  %395 = vst.msk [vmem:[#allocation2 + $0x90] sm:$0xff] %vm186, 0.0
  %396 = vst.msk [vmem:[#allocation2 + $0x98] sm:$0x3] %vm377, 0.0
  %397 = vst.msk [vmem:[#allocation2 + $0xa0] sm:$0xff] %vm186, 0.0
  %398 = vst.msk [vmem:[#allocation2 + $0xa8] sm:$0x3] %vm377, 0.0
  %399 = vst.msk [vmem:[#allocation2 + $0xb0] sm:$0xff] %vm186, 0.0
  %400 = vst.msk [vmem:[#allocation2 + $0xb8] sm:$0x3] %vm377, 0.0
  %401 = vst.msk [vmem:[#allocation2 + $0xc0] sm:$0xff] %vm186, 0.0
  %402 = vst.msk [vmem:[#allocation2 + $0xc8] sm:$0x3] %vm377, 0.0
  %403 = vst.msk [vmem:[#allocation2 + $0xd0] sm:$0xff] %vm186, 0.0
  %404 = vst.msk [vmem:[#allocation2 + $0xd8] sm:$0x3] %vm377, 0.0
  %405 = vst.msk [vmem:[#allocation2 + $0xe0] sm:$0xff] %vm186, 0.0
  %406 = vst.msk [vmem:[#allocation2 + $0xe8] sm:$0x3] %vm377, 0.0
  %407 = vst.msk [vmem:[#allocation2 + $0xf0] sm:$0xff] %vm186, 0.0
  %408 = vst.msk [vmem:[#allocation2 + $0xf8] sm:$0x3] %vm377, 0.0
  %409 = vst.msk [vmem:[#allocation2 + $0x100] sm:$0xff] %vm186, 0.0
  %410 = vst.msk [vmem:[#allocation2 + $0x108] sm:$0x3] %vm377, 0.0
  %411 = vst.msk [vmem:[#allocation2 + $0x110] sm:$0xff] %vm186, 0.0
  %412 = vst.msk [vmem:[#allocation2 + $0x118] sm:$0x3] %vm377, 0.0
  %413 = vst.msk [vmem:[#allocation2 + $0x120] sm:$0xff] %vm186, 0.0
  %414 = vst.msk [vmem:[#allocation2 + $0x128] sm:$0x3] %vm377, 0.0
  %415 = vst.msk [vmem:[#allocation2 + $0x130] sm:$0xff] %vm186, 0.0
  %416 = vst.msk [vmem:[#allocation2 + $0x138] sm:$0x3] %vm377, 0.0
  %s417 = scalar_lea.vmem [#allocation2], 16
  %418 = vst.msk [vmem:[%s417 + $0x1] sm:$0xff] %vm186, %v360
  %419 = vst.msk [vmem:[%s417 + $0x11] sm:$0xff] %vm186, %v361
  %420 = vst.msk [vmem:[%s417 + $0x21] sm:$0xff] %vm186, %v362
  %421 = vst.msk [vmem:[%s417 + $0x31] sm:$0xff] %vm186, %v363
  %422 = vst.msk [vmem:[%s417 + $0x41] sm:$0xff] %vm186, %v364
  %423 = vst.msk [vmem:[%s417 + $0x51] sm:$0xff] %vm186, %v365
  %424 = vst.msk [vmem:[%s417 + $0x61] sm:$0xff] %vm186, %v366
  %425 = vst.msk [vmem:[%s417 + $0x71] sm:$0xff] %vm186, %v367
  %426 = vst.msk [vmem:[%s417 + $0xa1] sm:$0xff] %vm186, %v368
  %427 = vst.msk [vmem:[%s417 + $0xb1] sm:$0xff] %vm186, %v369
  %428 = vst.msk [vmem:[%s417 + $0xc1] sm:$0xff] %vm186, %v370
  %429 = vst.msk [vmem:[%s417 + $0xd1] sm:$0xff] %vm186, %v371
  %430 = vst.msk [vmem:[%s417 + $0xe1] sm:$0xff] %vm186, %v372
  %431 = vst.msk [vmem:[%s417 + $0xf1] sm:$0xff] %vm186, %v373
  %432 = vst.msk [vmem:[%s417 + $0x101] sm:$0xff] %vm186, %v374
  %433 = vst.msk [vmem:[%s417 + $0x111] sm:$0xff] %vm186, %v375
  %v434 = vld [vmem:[#allocation2] sm:$0xff]
  %v435 = vld [vmem:[#allocation2 + $0x10] sm:$0xff]
  %v436 = vld [vmem:[#allocation2 + $0x20] sm:$0xff]
  %v437 = vld [vmem:[#allocation2 + $0x30] sm:$0xff]
  %v438 = vld [vmem:[#allocation2 + $0x40] sm:$0xff]
  %v439 = vld [vmem:[#allocation2 + $0x50] sm:$0xff]
  %v440 = vld [vmem:[#allocation2 + $0x60] sm:$0xff]
  %v441 = vld [vmem:[#allocation2 + $0x70] sm:$0xff]
  %v442 = vld [vmem:[#allocation2 + $0xa0] sm:$0xff]
  %v443 = vld [vmem:[#allocation2 + $0xb0] sm:$0xff]
  %v444 = vld [vmem:[#allocation2 + $0xc0] sm:$0xff]
  %v445 = vld [vmem:[#allocation2 + $0xd0] sm:$0xff]
  %v446 = vld [vmem:[#allocation2 + $0xe0] sm:$0xff]
  %v447 = vld [vmem:[#allocation2 + $0xf0] sm:$0xff]
  %v448 = vld [vmem:[#allocation2 + $0x100] sm:$0xff]
  %v449 = vld [vmem:[#allocation2 + $0x110] sm:$0xff]
  %v450 = vld [vmem:[#allocation2 + $0x1] sm:$0xff]
  %v451 = vld [vmem:[#allocation2 + $0x11] sm:$0xff]
  %v452 = vld [vmem:[#allocation2 + $0x21] sm:$0xff]
  %v453 = vld [vmem:[#allocation2 + $0x31] sm:$0xff]
  %v454 = vld [vmem:[#allocation2 + $0x41] sm:$0xff]
  %v455 = vld [vmem:[#allocation2 + $0x51] sm:$0xff]
  %v456 = vld [vmem:[#allocation2 + $0x61] sm:$0xff]
  %v457 = vld [vmem:[#allocation2 + $0x71] sm:$0xff]
  %v458 = vld [vmem:[#allocation2 + $0xa1] sm:$0xff]
  %v459 = vld [vmem:[#allocation2 + $0xb1] sm:$0xff]
  %v460 = vld [vmem:[#allocation2 + $0xc1] sm:$0xff]
  %v461 = vld [vmem:[#allocation2 + $0xd1] sm:$0xff]
  %v462 = vld [vmem:[#allocation2 + $0xe1] sm:$0xff]
  %v463 = vld [vmem:[#allocation2 + $0xf1] sm:$0xff]
  %v464 = vld [vmem:[#allocation2 + $0x101] sm:$0xff]
  %v465 = vld [vmem:[#allocation2 + $0x111] sm:$0xff]
  %v466 = vld [vmem:[#allocation2 + $0x2] sm:$0xff]
  %v467 = vld [vmem:[#allocation2 + $0x12] sm:$0xff]
  %v468 = vld [vmem:[#allocation2 + $0x22] sm:$0xff]
  %v469 = vld [vmem:[#allocation2 + $0x32] sm:$0xff]
  %v470 = vld [vmem:[#allocation2 + $0x42] sm:$0xff]
  %v471 = vld [vmem:[#allocation2 + $0x52] sm:$0xff]
  %v472 = vld [vmem:[#allocation2 + $0x62] sm:$0xff]
  %v473 = vld [vmem:[#allocation2 + $0x72] sm:$0xff]
  %v474 = vld [vmem:[#allocation2 + $0xa2] sm:$0xff]
  %v475 = vld [vmem:[#allocation2 + $0xb2] sm:$0xff]
  %v476 = vld [vmem:[#allocation2 + $0xc2] sm:$0xff]
  %v477 = vld [vmem:[#allocation2 + $0xd2] sm:$0xff]
  %v478 = vld [vmem:[#allocation2 + $0xe2] sm:$0xff]
  %v479 = vld [vmem:[#allocation2 + $0xf2] sm:$0xff]
  %v480 = vld [vmem:[#allocation2 + $0x102] sm:$0xff]
  %v481 = vld [vmem:[#allocation2 + $0x112] sm:$0xff]
  %v482 = vld [vmem:[%s417] sm:$0xff]
  %v483 = vld [vmem:[%s417 + $0x10] sm:$0xff]
  %v484 = vld [vmem:[%s417 + $0x20] sm:$0xff]
  %v485 = vld [vmem:[%s417 + $0x30] sm:$0xff]
  %v486 = vld [vmem:[%s417 + $0x40] sm:$0xff]
  %v487 = vld [vmem:[%s417 + $0x50] sm:$0xff]
  %v488 = vld [vmem:[%s417 + $0x60] sm:$0xff]
  %v489 = vld [vmem:[%s417 + $0x70] sm:$0xff]
  %v490 = vld [vmem:[%s417 + $0xa0] sm:$0xff]
  %v491 = vld [vmem:[%s417 + $0xb0] sm:$0xff]
  %v492 = vld [vmem:[%s417 + $0xc0] sm:$0xff]
  %v493 = vld [vmem:[%s417 + $0xd0] sm:$0xff]
  %v494 = vld [vmem:[%s417 + $0xe0] sm:$0xff]
  %v495 = vld [vmem:[%s417 + $0xf0] sm:$0xff]
  %v496 = vld [vmem:[%s417 + $0x100] sm:$0xff]
  %v497 = vld [vmem:[%s417 + $0x110] sm:$0xff]
  %v498 = vld [vmem:[%s417 + $0x1] sm:$0xff]
  %v499 = vld [vmem:[%s417 + $0x11] sm:$0xff]
  %v500 = vld [vmem:[%s417 + $0x21] sm:$0xff]
  %v501 = vld [vmem:[%s417 + $0x31] sm:$0xff]
  %v502 = vld [vmem:[%s417 + $0x41] sm:$0xff]
  %v503 = vld [vmem:[%s417 + $0x51] sm:$0xff]
  %v504 = vld [vmem:[%s417 + $0x61] sm:$0xff]
  %v505 = vld [vmem:[%s417 + $0x71] sm:$0xff]
  %v506 = vld [vmem:[%s417 + $0xa1] sm:$0xff]
  %v507 = vld [vmem:[%s417 + $0xb1] sm:$0xff]
  %v508 = vld [vmem:[%s417 + $0xc1] sm:$0xff]
  %v509 = vld [vmem:[%s417 + $0xd1] sm:$0xff]
  %v510 = vld [vmem:[%s417 + $0xe1] sm:$0xff]
  %v511 = vld [vmem:[%s417 + $0xf1] sm:$0xff]
  %v512 = vld [vmem:[%s417 + $0x101] sm:$0xff]
  %v513 = vld [vmem:[%s417 + $0x111] sm:$0xff]
  %v514 = vld [vmem:[%s417 + $0x2] sm:$0xff]
  %v515 = vld [vmem:[%s417 + $0x12] sm:$0xff]
  %v516 = vld [vmem:[%s417 + $0x22] sm:$0xff]
  %v517 = vld [vmem:[%s417 + $0x32] sm:$0xff]
  %v518 = vld [vmem:[%s417 + $0x42] sm:$0xff]
  %v519 = vld [vmem:[%s417 + $0x52] sm:$0xff]
  %v520 = vld [vmem:[%s417 + $0x62] sm:$0xff]
  %v521 = vld [vmem:[%s417 + $0x72] sm:$0xff]
  %v522 = vld [vmem:[%s417 + $0xa2] sm:$0xff]
  %v523 = vld [vmem:[%s417 + $0xb2] sm:$0xff]
  %v524 = vld [vmem:[%s417 + $0xc2] sm:$0xff]
  %v525 = vld [vmem:[%s417 + $0xd2] sm:$0xff]
  %v526 = vld [vmem:[%s417 + $0xe2] sm:$0xff]
  %v527 = vld [vmem:[%s417 + $0xf2] sm:$0xff]
  %v528 = vld [vmem:[%s417 + $0x102] sm:$0xff]
  %v529 = vld [vmem:[%s417 + $0x112] sm:$0xff]
  %s530 = scalar_lea.vmem [#allocation2], 32
  %v531 = vld [vmem:[%s530] sm:$0xff]
  %v532 = vld [vmem:[%s530 + $0x10] sm:$0xff]
  %v533 = vld [vmem:[%s530 + $0x20] sm:$0xff]
  %v534 = vld [vmem:[%s530 + $0x30] sm:$0xff]
  %v535 = vld [vmem:[%s530 + $0x40] sm:$0xff]
  %v536 = vld [vmem:[%s530 + $0x50] sm:$0xff]
  %v537 = vld [vmem:[%s530 + $0x60] sm:$0xff]
  %v538 = vld [vmem:[%s530 + $0x70] sm:$0xff]
  %v539 = vld [vmem:[%s530 + $0xa0] sm:$0xff]
  %v540 = vld [vmem:[%s530 + $0xb0] sm:$0xff]
  %v541 = vld [vmem:[%s530 + $0xc0] sm:$0xff]
  %v542 = vld [vmem:[%s530 + $0xd0] sm:$0xff]
  %v543 = vld [vmem:[%s530 + $0xe0] sm:$0xff]
  %v544 = vld [vmem:[%s530 + $0xf0] sm:$0xff]
  %v545 = vld [vmem:[%s530 + $0x100] sm:$0xff]
  %v546 = vld [vmem:[%s530 + $0x110] sm:$0xff]
  %v547 = vld [vmem:[%s530 + $0x1] sm:$0xff]
  %v548 = vld [vmem:[%s530 + $0x11] sm:$0xff]
  %v549 = vld [vmem:[%s530 + $0x21] sm:$0xff]
  %v550 = vld [vmem:[%s530 + $0x31] sm:$0xff]
  %v551 = vld [vmem:[%s530 + $0x41] sm:$0xff]
  %v552 = vld [vmem:[%s530 + $0x51] sm:$0xff]
  %v553 = vld [vmem:[%s530 + $0x61] sm:$0xff]
  %v554 = vld [vmem:[%s530 + $0x71] sm:$0xff]
  %v555 = vld [vmem:[%s530 + $0xa1] sm:$0xff]
  %v556 = vld [vmem:[%s530 + $0xb1] sm:$0xff]
  %v557 = vld [vmem:[%s530 + $0xc1] sm:$0xff]
  %v558 = vld [vmem:[%s530 + $0xd1] sm:$0xff]
  %v559 = vld [vmem:[%s530 + $0xe1] sm:$0xff]
  %v560 = vld [vmem:[%s530 + $0xf1] sm:$0xff]
  %v561 = vld [vmem:[%s530 + $0x101] sm:$0xff]
  %v562 = vld [vmem:[%s530 + $0x111] sm:$0xff]
  %v563 = vld [vmem:[%s530 + $0x2] sm:$0xff]
  %v564 = vld [vmem:[%s530 + $0x12] sm:$0xff]
  %v565 = vld [vmem:[%s530 + $0x22] sm:$0xff]
  %v566 = vld [vmem:[%s530 + $0x32] sm:$0xff]
  %v567 = vld [vmem:[%s530 + $0x42] sm:$0xff]
  %v568 = vld [vmem:[%s530 + $0x52] sm:$0xff]
  %v569 = vld [vmem:[%s530 + $0x62] sm:$0xff]
  %v570 = vld [vmem:[%s530 + $0x72] sm:$0xff]
  %v571 = vld [vmem:[%s530 + $0xa2] sm:$0xff]
  %v572 = vld [vmem:[%s530 + $0xb2] sm:$0xff]
  %v573 = vld [vmem:[%s530 + $0xc2] sm:$0xff]
  %v574 = vld [vmem:[%s530 + $0xd2] sm:$0xff]
  %v575 = vld [vmem:[%s530 + $0xe2] sm:$0xff]
  %v576 = vld [vmem:[%s530 + $0xf2] sm:$0xff]
  %v577 = vld [vmem:[%s530 + $0x102] sm:$0xff]
  %v578 = vld [vmem:[%s530 + $0x112] sm:$0xff]
  %595 = vrot.lane.b32.xlu0 %v450, 8
  %v596 = vpop.permute.xlu0 %595
  %597 = vrot.lane.b32.xlu0 %v451, 8
  %v598 = vpop.permute.xlu0 %597
  %599 = vrot.lane.b32.xlu0 %v452, 8
  %v600 = vpop.permute.xlu0 %599
  %601 = vrot.lane.b32.xlu0 %v453, 8
  %v602 = vpop.permute.xlu0 %601
  %603 = vrot.lane.b32.xlu0 %v454, 8
  %v604 = vpop.permute.xlu0 %603
  %605 = vrot.lane.b32.xlu0 %v455, 8
  %v606 = vpop.permute.xlu0 %605
  %607 = vrot.lane.b32.xlu0 %v456, 8
  %v608 = vpop.permute.xlu0 %607
  %609 = vrot.lane.b32.xlu0 %v457, 8
  %v610 = vpop.permute.xlu0 %609
  %611 = vrot.lane.b32.xlu0 %v458, 8
  %v612 = vpop.permute.xlu0 %611
  %613 = vrot.lane.b32.xlu0 %v459, 8
  %v614 = vpop.permute.xlu0 %613
  %615 = vrot.lane.b32.xlu0 %v460, 8
  %v616 = vpop.permute.xlu0 %615
  %617 = vrot.lane.b32.xlu0 %v461, 8
  %v618 = vpop.permute.xlu0 %617
  %619 = vrot.lane.b32.xlu0 %v462, 8
  %v620 = vpop.permute.xlu0 %619
  %621 = vrot.lane.b32.xlu0 %v463, 8
  %v622 = vpop.permute.xlu0 %621
  %623 = vrot.lane.b32.xlu0 %v464, 8
  %v624 = vpop.permute.xlu0 %623
  %625 = vrot.lane.b32.xlu0 %v465, 8
  %v626 = vpop.permute.xlu0 %625
  %659 = vrot.lane.b32.xlu0 %v466, 16
  %v660 = vpop.permute.xlu0 %659
  %661 = vrot.lane.b32.xlu0 %v467, 16
  %v662 = vpop.permute.xlu0 %661
  %663 = vrot.lane.b32.xlu0 %v468, 16
  %v664 = vpop.permute.xlu0 %663
  %665 = vrot.lane.b32.xlu0 %v469, 16
  %v666 = vpop.permute.xlu0 %665
  %667 = vrot.lane.b32.xlu0 %v470, 16
  %v668 = vpop.permute.xlu0 %667
  %669 = vrot.lane.b32.xlu0 %v471, 16
  %v670 = vpop.permute.xlu0 %669
  %671 = vrot.lane.b32.xlu0 %v472, 16
  %v672 = vpop.permute.xlu0 %671
  %673 = vrot.lane.b32.xlu0 %v473, 16
  %v674 = vpop.permute.xlu0 %673
  %675 = vrot.lane.b32.xlu0 %v474, 16
  %v676 = vpop.permute.xlu0 %675
  %677 = vrot.lane.b32.xlu0 %v475, 16
  %v678 = vpop.permute.xlu0 %677
  %679 = vrot.lane.b32.xlu0 %v476, 16
  %v680 = vpop.permute.xlu0 %679
  %681 = vrot.lane.b32.xlu0 %v477, 16
  %v682 = vpop.permute.xlu0 %681
  %683 = vrot.lane.b32.xlu0 %v478, 16
  %v684 = vpop.permute.xlu0 %683
  %685 = vrot.lane.b32.xlu0 %v479, 16
  %v686 = vpop.permute.xlu0 %685
  %687 = vrot.lane.b32.xlu0 %v480, 16
  %v688 = vpop.permute.xlu0 %687
  %689 = vrot.lane.b32.xlu0 %v481, 16
  %v690 = vpop.permute.xlu0 %689
  %723 = vrot.lane.b32.xlu0 %v482, 24
  %v724 = vpop.permute.xlu0 %723
  %725 = vrot.lane.b32.xlu0 %v483, 24
  %v726 = vpop.permute.xlu0 %725
  %727 = vrot.lane.b32.xlu0 %v484, 24
  %v728 = vpop.permute.xlu0 %727
  %729 = vrot.lane.b32.xlu0 %v485, 24
  %v730 = vpop.permute.xlu0 %729
  %731 = vrot.lane.b32.xlu0 %v486, 24
  %v732 = vpop.permute.xlu0 %731
  %733 = vrot.lane.b32.xlu0 %v487, 24
  %v734 = vpop.permute.xlu0 %733
  %735 = vrot.lane.b32.xlu0 %v488, 24
  %v736 = vpop.permute.xlu0 %735
  %737 = vrot.lane.b32.xlu0 %v489, 24
  %v738 = vpop.permute.xlu0 %737
  %739 = vrot.lane.b32.xlu0 %v490, 24
  %v740 = vpop.permute.xlu0 %739
  %741 = vrot.lane.b32.xlu0 %v491, 24
  %v742 = vpop.permute.xlu0 %741
  %743 = vrot.lane.b32.xlu0 %v492, 24
  %v744 = vpop.permute.xlu0 %743
  %745 = vrot.lane.b32.xlu0 %v493, 24
  %v746 = vpop.permute.xlu0 %745
  %747 = vrot.lane.b32.xlu0 %v494, 24
  %v748 = vpop.permute.xlu0 %747
  %749 = vrot.lane.b32.xlu0 %v495, 24
  %v750 = vpop.permute.xlu0 %749
  %751 = vrot.lane.b32.xlu0 %v496, 24
  %v752 = vpop.permute.xlu0 %751
  %753 = vrot.lane.b32.xlu0 %v497, 24
  %v754 = vpop.permute.xlu0 %753
  %787 = vrot.lane.b32.xlu0 %v498, 32
  %v788 = vpop.permute.xlu0 %787
  %789 = vrot.lane.b32.xlu0 %v499, 32
  %v790 = vpop.permute.xlu0 %789
  %791 = vrot.lane.b32.xlu0 %v500, 32
  %v792 = vpop.permute.xlu0 %791
  %793 = vrot.lane.b32.xlu0 %v501, 32
  %v794 = vpop.permute.xlu0 %793
  %795 = vrot.lane.b32.xlu0 %v502, 32
  %v796 = vpop.permute.xlu0 %795
  %797 = vrot.lane.b32.xlu0 %v503, 32
  %v798 = vpop.permute.xlu0 %797
  %799 = vrot.lane.b32.xlu0 %v504, 32
  %v800 = vpop.permute.xlu0 %799
  %801 = vrot.lane.b32.xlu0 %v505, 32
  %v802 = vpop.permute.xlu0 %801
  %803 = vrot.lane.b32.xlu0 %v506, 32
  %v804 = vpop.permute.xlu0 %803
  %805 = vrot.lane.b32.xlu0 %v507, 32
  %v806 = vpop.permute.xlu0 %805
  %807 = vrot.lane.b32.xlu0 %v508, 32
  %v808 = vpop.permute.xlu0 %807
  %809 = vrot.lane.b32.xlu0 %v509, 32
  %v810 = vpop.permute.xlu0 %809
  %811 = vrot.lane.b32.xlu0 %v510, 32
  %v812 = vpop.permute.xlu0 %811
  %813 = vrot.lane.b32.xlu0 %v511, 32
  %v814 = vpop.permute.xlu0 %813
  %815 = vrot.lane.b32.xlu0 %v512, 32
  %v816 = vpop.permute.xlu0 %815
  %817 = vrot.lane.b32.xlu0 %v513, 32
  %v818 = vpop.permute.xlu0 %817
  %851 = vrot.lane.b32.xlu0 %v514, 40
  %v852 = vpop.permute.xlu0 %851
  %853 = vrot.lane.b32.xlu0 %v515, 40
  %v854 = vpop.permute.xlu0 %853
  %855 = vrot.lane.b32.xlu0 %v516, 40
  %v856 = vpop.permute.xlu0 %855
  %857 = vrot.lane.b32.xlu0 %v517, 40
  %v858 = vpop.permute.xlu0 %857
  %859 = vrot.lane.b32.xlu0 %v518, 40
  %v860 = vpop.permute.xlu0 %859
  %861 = vrot.lane.b32.xlu0 %v519, 40
  %v862 = vpop.permute.xlu0 %861
  %863 = vrot.lane.b32.xlu0 %v520, 40
  %v864 = vpop.permute.xlu0 %863
  %865 = vrot.lane.b32.xlu0 %v521, 40
  %v866 = vpop.permute.xlu0 %865
  %867 = vrot.lane.b32.xlu0 %v522, 40
  %v868 = vpop.permute.xlu0 %867
  %869 = vrot.lane.b32.xlu0 %v523, 40
  %v870 = vpop.permute.xlu0 %869
  %871 = vrot.lane.b32.xlu0 %v524, 40
  %v872 = vpop.permute.xlu0 %871
  %873 = vrot.lane.b32.xlu0 %v525, 40
  %v874 = vpop.permute.xlu0 %873
  %875 = vrot.lane.b32.xlu0 %v526, 40
  %v876 = vpop.permute.xlu0 %875
  %877 = vrot.lane.b32.xlu0 %v527, 40
  %v878 = vpop.permute.xlu0 %877
  %879 = vrot.lane.b32.xlu0 %v528, 40
  %v880 = vpop.permute.xlu0 %879
  %881 = vrot.lane.b32.xlu0 %v529, 40
  %v882 = vpop.permute.xlu0 %881
  %915 = vrot.lane.b32.xlu0 %v531, 48
  %v916 = vpop.permute.xlu0 %915
  %917 = vrot.lane.b32.xlu0 %v532, 48
  %v918 = vpop.permute.xlu0 %917
  %919 = vrot.lane.b32.xlu0 %v533, 48
  %v920 = vpop.permute.xlu0 %919
  %921 = vrot.lane.b32.xlu0 %v534, 48
  %v922 = vpop.permute.xlu0 %921
  %923 = vrot.lane.b32.xlu0 %v535, 48
  %v924 = vpop.permute.xlu0 %923
  %925 = vrot.lane.b32.xlu0 %v536, 48
  %v926 = vpop.permute.xlu0 %925
  %927 = vrot.lane.b32.xlu0 %v537, 48
  %v928 = vpop.permute.xlu0 %927
  %929 = vrot.lane.b32.xlu0 %v538, 48
  %v930 = vpop.permute.xlu0 %929
  %931 = vrot.lane.b32.xlu0 %v539, 48
  %v932 = vpop.permute.xlu0 %931
  %933 = vrot.lane.b32.xlu0 %v540, 48
  %v934 = vpop.permute.xlu0 %933
  %935 = vrot.lane.b32.xlu0 %v541, 48
  %v936 = vpop.permute.xlu0 %935
  %937 = vrot.lane.b32.xlu0 %v542, 48
  %v938 = vpop.permute.xlu0 %937
  %939 = vrot.lane.b32.xlu0 %v543, 48
  %v940 = vpop.permute.xlu0 %939
  %941 = vrot.lane.b32.xlu0 %v544, 48
  %v942 = vpop.permute.xlu0 %941
  %943 = vrot.lane.b32.xlu0 %v545, 48
  %v944 = vpop.permute.xlu0 %943
  %945 = vrot.lane.b32.xlu0 %v546, 48
  %v946 = vpop.permute.xlu0 %945
  %979 = vrot.lane.b32.xlu0 %v547, 56
  %v980 = vpop.permute.xlu0 %979
  %981 = vrot.lane.b32.xlu0 %v548, 56
  %v982 = vpop.permute.xlu0 %981
  %983 = vrot.lane.b32.xlu0 %v549, 56
  %v984 = vpop.permute.xlu0 %983
  %985 = vrot.lane.b32.xlu0 %v550, 56
  %v986 = vpop.permute.xlu0 %985
  %987 = vrot.lane.b32.xlu0 %v551, 56
  %v988 = vpop.permute.xlu0 %987
  %989 = vrot.lane.b32.xlu0 %v552, 56
  %v990 = vpop.permute.xlu0 %989
  %991 = vrot.lane.b32.xlu0 %v553, 56
  %v992 = vpop.permute.xlu0 %991
  %993 = vrot.lane.b32.xlu0 %v554, 56
  %v994 = vpop.permute.xlu0 %993
  %995 = vrot.lane.b32.xlu0 %v555, 56
  %v996 = vpop.permute.xlu0 %995
  %997 = vrot.lane.b32.xlu0 %v556, 56
  %v998 = vpop.permute.xlu0 %997
  %999 = vrot.lane.b32.xlu0 %v557, 56
  %v1000 = vpop.permute.xlu0 %999
  %1001 = vrot.lane.b32.xlu0 %v558, 56
  %v1002 = vpop.permute.xlu0 %1001
  %1003 = vrot.lane.b32.xlu0 %v559, 56
  %v1004 = vpop.permute.xlu0 %1003
  %1005 = vrot.lane.b32.xlu0 %v560, 56
  %v1006 = vpop.permute.xlu0 %1005
  %1007 = vrot.lane.b32.xlu0 %v561, 56
  %v1008 = vpop.permute.xlu0 %1007
  %1009 = vrot.lane.b32.xlu0 %v562, 56
  %v1010 = vpop.permute.xlu0 %1009
  %1043 = vrot.lane.b32.xlu0 %v563, 64
  %v1044 = vpop.permute.xlu0 %1043
  %1045 = vrot.lane.b32.xlu0 %v564, 64
  %v1046 = vpop.permute.xlu0 %1045
  %1047 = vrot.lane.b32.xlu0 %v565, 64
  %v1048 = vpop.permute.xlu0 %1047
  %1049 = vrot.lane.b32.xlu0 %v566, 64
  %v1050 = vpop.permute.xlu0 %1049
  %1051 = vrot.lane.b32.xlu0 %v567, 64
  %v1052 = vpop.permute.xlu0 %1051
  %1053 = vrot.lane.b32.xlu0 %v568, 64
  %v1054 = vpop.permute.xlu0 %1053
  %1055 = vrot.lane.b32.xlu0 %v569, 64
  %v1056 = vpop.permute.xlu0 %1055
  %1057 = vrot.lane.b32.xlu0 %v570, 64
  %v1058 = vpop.permute.xlu0 %1057
  %1059 = vrot.lane.b32.xlu0 %v571, 64
  %v1060 = vpop.permute.xlu0 %1059
  %1061 = vrot.lane.b32.xlu0 %v572, 64
  %v1062 = vpop.permute.xlu0 %1061
  %1063 = vrot.lane.b32.xlu0 %v573, 64
  %v1064 = vpop.permute.xlu0 %1063
  %1065 = vrot.lane.b32.xlu0 %v574, 64
  %v1066 = vpop.permute.xlu0 %1065
  %1067 = vrot.lane.b32.xlu0 %v575, 64
  %v1068 = vpop.permute.xlu0 %1067
  %1069 = vrot.lane.b32.xlu0 %v576, 64
  %v1070 = vpop.permute.xlu0 %1069
  %1071 = vrot.lane.b32.xlu0 %v577, 64
  %v1072 = vpop.permute.xlu0 %1071
  %1073 = vrot.lane.b32.xlu0 %v578, 64
  %v1074 = vpop.permute.xlu0 %1073
  %v1091 = vsel %vm186, %v434, %v596
  %v1092 = vsel %vm186, %v435, %v598
  %v1093 = vsel %vm186, %v436, %v600
  %v1094 = vsel %vm186, %v437, %v602
  %v1095 = vsel %vm186, %v438, %v604
  %v1096 = vsel %vm186, %v439, %v606
  %v1097 = vsel %vm186, %v440, %v608
  %v1098 = vsel %vm186, %v441, %v610
  %v1099 = vsel %vm186, %v442, %v612
  %v1100 = vsel %vm186, %v443, %v614
  %v1101 = vsel %vm186, %v444, %v616
  %v1102 = vsel %vm186, %v445, %v618
  %v1103 = vsel %vm186, %v446, %v620
  %v1104 = vsel %vm186, %v447, %v622
  %v1105 = vsel %vm186, %v448, %v624
  %v1106 = vsel %vm186, %v449, %v626
  %vm1107 = vcmask 130048
  %v1108 = vsel %vm1107, %v1091, %v660
  %v1109 = vsel %vm1107, %v1092, %v662
  %v1110 = vsel %vm1107, %v1093, %v664
  %v1111 = vsel %vm1107, %v1094, %v666
  %v1112 = vsel %vm1107, %v1095, %v668
  %v1113 = vsel %vm1107, %v1096, %v670
  %v1114 = vsel %vm1107, %v1097, %v672
  %v1115 = vsel %vm1107, %v1098, %v674
  %v1116 = vsel %vm1107, %v1099, %v676
  %v1117 = vsel %vm1107, %v1100, %v678
  %v1118 = vsel %vm1107, %v1101, %v680
  %v1119 = vsel %vm1107, %v1102, %v682
  %v1120 = vsel %vm1107, %v1103, %v684
  %v1121 = vsel %vm1107, %v1104, %v686
  %v1122 = vsel %vm1107, %v1105, %v688
  %v1123 = vsel %vm1107, %v1106, %v690
  %vm1124 = vcmask 195584
  %v1125 = vsel %vm1124, %v1108, %v724
  %v1126 = vsel %vm1124, %v1109, %v726
  %v1127 = vsel %vm1124, %v1110, %v728
  %v1128 = vsel %vm1124, %v1111, %v730
  %v1129 = vsel %vm1124, %v1112, %v732
  %v1130 = vsel %vm1124, %v1113, %v734
  %v1131 = vsel %vm1124, %v1114, %v736
  %v1132 = vsel %vm1124, %v1115, %v738
  %v1133 = vsel %vm1124, %v1116, %v740
  %v1134 = vsel %vm1124, %v1117, %v742
  %v1135 = vsel %vm1124, %v1118, %v744
  %v1136 = vsel %vm1124, %v1119, %v746
  %v1137 = vsel %vm1124, %v1120, %v748
  %v1138 = vsel %vm1124, %v1121, %v750
  %v1139 = vsel %vm1124, %v1122, %v752
  %v1140 = vsel %vm1124, %v1123, %v754
  %vm1141 = vcmask 261120
  %v1142 = vsel %vm1141, %v1125, %v788
  %v1143 = vsel %vm1141, %v1126, %v790
  %v1144 = vsel %vm1141, %v1127, %v792
  %v1145 = vsel %vm1141, %v1128, %v794
  %v1146 = vsel %vm1141, %v1129, %v796
  %v1147 = vsel %vm1141, %v1130, %v798
  %v1148 = vsel %vm1141, %v1131, %v800
  %v1149 = vsel %vm1141, %v1132, %v802
  %v1150 = vsel %vm1141, %v1133, %v804
  %v1151 = vsel %vm1141, %v1134, %v806
  %v1152 = vsel %vm1141, %v1135, %v808
  %v1153 = vsel %vm1141, %v1136, %v810
  %v1154 = vsel %vm1141, %v1137, %v812
  %v1155 = vsel %vm1141, %v1138, %v814
  %v1156 = vsel %vm1141, %v1139, %v816
  %v1157 = vsel %vm1141, %v1140, %v818
  %vm1158 = vcmask 326656
  %v1159 = vsel %vm1158, %v1142, %v852
  %v1160 = vsel %vm1158, %v1143, %v854
  %v1161 = vsel %vm1158, %v1144, %v856
  %v1162 = vsel %vm1158, %v1145, %v858
  %v1163 = vsel %vm1158, %v1146, %v860
  %v1164 = vsel %vm1158, %v1147, %v862
  %v1165 = vsel %vm1158, %v1148, %v864
  %v1166 = vsel %vm1158, %v1149, %v866
  %v1167 = vsel %vm1158, %v1150, %v868
  %v1168 = vsel %vm1158, %v1151, %v870
  %v1169 = vsel %vm1158, %v1152, %v872
  %v1170 = vsel %vm1158, %v1153, %v874
  %v1171 = vsel %vm1158, %v1154, %v876
  %v1172 = vsel %vm1158, %v1155, %v878
  %v1173 = vsel %vm1158, %v1156, %v880
  %v1174 = vsel %vm1158, %v1157, %v882
  %vm1175 = vcmask 392192
  %v1176 = vsel %vm1175, %v1159, %v916
  %v1177 = vsel %vm1175, %v1160, %v918
  %v1178 = vsel %vm1175, %v1161, %v920
  %v1179 = vsel %vm1175, %v1162, %v922
  %v1180 = vsel %vm1175, %v1163, %v924
  %v1181 = vsel %vm1175, %v1164, %v926
  %v1182 = vsel %vm1175, %v1165, %v928
  %v1183 = vsel %vm1175, %v1166, %v930
  %v1184 = vsel %vm1175, %v1167, %v932
  %v1185 = vsel %vm1175, %v1168, %v934
  %v1186 = vsel %vm1175, %v1169, %v936
  %v1187 = vsel %vm1175, %v1170, %v938
  %v1188 = vsel %vm1175, %v1171, %v940
  %v1189 = vsel %vm1175, %v1172, %v942
  %v1190 = vsel %vm1175, %v1173, %v944
  %v1191 = vsel %vm1175, %v1174, %v946
  %vm1192 = vcmask 457728
  %v1193 = vsel %vm1192, %v1176, %v980
  %v1194 = vsel %vm1192, %v1177, %v982
  %v1195 = vsel %vm1192, %v1178, %v984
  %v1196 = vsel %vm1192, %v1179, %v986
  %v1197 = vsel %vm1192, %v1180, %v988
  %v1198 = vsel %vm1192, %v1181, %v990
  %v1199 = vsel %vm1192, %v1182, %v992
  %v1200 = vsel %vm1192, %v1183, %v994
  %v1201 = vsel %vm1192, %v1184, %v996
  %v1202 = vsel %vm1192, %v1185, %v998
  %v1203 = vsel %vm1192, %v1186, %v1000
  %v1204 = vsel %vm1192, %v1187, %v1002
  %v1205 = vsel %vm1192, %v1188, %v1004
  %v1206 = vsel %vm1192, %v1189, %v1006
  %v1207 = vsel %vm1192, %v1190, %v1008
  %v1208 = vsel %vm1192, %v1191, %v1010
  %vm1209 = vcmask 523264
  %v1210 = vsel %vm1209, %v1193, %v1044
  %v1211 = vsel %vm1209, %v1194, %v1046
  %v1212 = vsel %vm1209, %v1195, %v1048
  %v1213 = vsel %vm1209, %v1196, %v1050
  %v1214 = vsel %vm1209, %v1197, %v1052
  %v1215 = vsel %vm1209, %v1198, %v1054
  %v1216 = vsel %vm1209, %v1199, %v1056
  %v1217 = vsel %vm1209, %v1200, %v1058
  %v1218 = vsel %vm1209, %v1201, %v1060
  %v1219 = vsel %vm1209, %v1202, %v1062
  %v1220 = vsel %vm1209, %v1203, %v1064
  %v1221 = vsel %vm1209, %v1204, %v1066
  %v1222 = vsel %vm1209, %v1205, %v1068
  %v1223 = vsel %vm1209, %v1206, %v1070
  %v1224 = vsel %vm1209, %v1207, %v1072
  %v1225 = vsel %vm1209, %v1208, %v1074
  %v1226 = vld [vmem:[%s4] sm:$0xff]
  %v1227 = vld [vmem:[%s4 + $0x8] sm:$0xff]
  %v1228 = vld [vmem:[%s4 + $0x10] sm:$0xff]
  %v1229 = vld [vmem:[%s4 + $0x18] sm:$0xff]
  %v1230 = vld [vmem:[%s4 + $0x20] sm:$0xff]
  %v1231 = vld [vmem:[%s4 + $0x28] sm:$0xff]
  %v1232 = vld [vmem:[%s4 + $0x30] sm:$0xff]
  %v1233 = vld [vmem:[%s4 + $0x38] sm:$0xff]
  %v1234 = vld [vmem:[%s4 + $0x40] sm:$0xff]
  %v1235 = vld [vmem:[%s5] sm:$0x1]
  %v1237 = vperm.slane %v1235, 0
  %vm1239 = vcmask 588800
  %v1241 = vsel %vm1239, %v1210, 0
  %v1244 = vsel %vm1239, %v1211, 0
  %v1247 = vsel %vm1239, %v1212, 0
  %v1250 = vsel %vm1239, %v1213, 0
  %v1253 = vsel %vm1239, %v1214, 0
  %v1256 = vsel %vm1239, %v1215, 0
  %v1259 = vsel %vm1239, %v1216, 0
  %v1262 = vsel %vm1239, %v1217, 0
  %v1265 = vsel %vm1239, %v1218, 0
  %v1268 = vsel %vm1239, %v1219, 0
  %v1271 = vsel %vm1239, %v1220, 0
  %v1274 = vsel %vm1239, %v1221, 0
  %v1277 = vsel %vm1239, %v1222, 0
  %v1280 = vsel %vm1239, %v1223, 0
  %v1283 = vsel %vm1239, %v1224, 0
  %v1286 = vsel %vm1239, %v1225, 0
  %1288 = vmatpush.msra.mxu0 0.0
  %1289 = vmatpush.msra.mxu0 0.0
  %1290 = vmatpush.msra.mxu0 0.0
  %1291 = vmatpush.msra.mxu0 0.0
  %1292 = vmatpush.msra.mxu0 0.0
  %1293 = vmatpush.msra.mxu0 0.0
  %1294 = vmatpush.msra.mxu0 0.0
  %1295 = vmatpush.msra.mxu0 %v1234
  %1296 = vmatpush.msra.mxu0 %v1233
  %1297 = vmatpush.msra.mxu0 %v1232
  %1298 = vmatpush.msra.mxu0 %v1231
  %1299 = vmatpush.msra.mxu0 %v1230
  %1300 = vmatpush.msra.mxu0 %v1229
  %1301 = vmatpush.msra.mxu0 %v1228
  %1302 = vmatpush.msra.mxu0 %v1227
  %1303 = vmatpush.msra.mxu0 %v1226
  %1304 = vmatmul.f32.gmra.mxu0 %v1241
  %v1305 = vpop.f32.mrf.mxu0
  %v1306 = vadd.f32 %v1237, %v1305
  %1307 = vmatmul.f32.gmra.mxu0 %v1244
  %v1308 = vpop.f32.mrf.mxu0
  %v1309 = vadd.f32 %v1237, %v1308
  %1310 = vmatmul.f32.gmra.mxu0 %v1247
  %v1311 = vpop.f32.mrf.mxu0
  %v1312 = vadd.f32 %v1237, %v1311
  %1313 = vmatmul.f32.gmra.mxu0 %v1250
  %v1314 = vpop.f32.mrf.mxu0
  %v1315 = vadd.f32 %v1237, %v1314
  %1316 = vmatmul.f32.gmra.mxu0 %v1253
  %v1317 = vpop.f32.mrf.mxu0
  %v1318 = vadd.f32 %v1237, %v1317
  %1319 = vmatmul.f32.gmra.mxu0 %v1256
  %v1320 = vpop.f32.mrf.mxu0
  %v1321 = vadd.f32 %v1237, %v1320
  %1322 = vmatmul.f32.gmra.mxu0 %v1259
  %v1323 = vpop.f32.mrf.mxu0
  %v1324 = vadd.f32 %v1237, %v1323
  %1325 = vmatmul.f32.gmra.mxu0 %v1262
  %v1326 = vpop.f32.mrf.mxu0
  %v1327 = vadd.f32 %v1237, %v1326
  %1328 = vmatmul.f32.gmra.mxu0 %v1265
  %v1329 = vpop.f32.mrf.mxu0
  %v1330 = vadd.f32 %v1237, %v1329
  %1331 = vmatmul.f32.gmra.mxu0 %v1268
  %v1332 = vpop.f32.mrf.mxu0
  %v1333 = vadd.f32 %v1237, %v1332
  %1334 = vmatmul.f32.gmra.mxu0 %v1271
  %v1335 = vpop.f32.mrf.mxu0
  %v1336 = vadd.f32 %v1237, %v1335
  %1337 = vmatmul.f32.gmra.mxu0 %v1274
  %v1338 = vpop.f32.mrf.mxu0
  %v1339 = vadd.f32 %v1237, %v1338
  %1340 = vmatmul.f32.gmra.mxu0 %v1277
  %v1341 = vpop.f32.mrf.mxu0
  %v1342 = vadd.f32 %v1237, %v1341
  %1343 = vmatmul.f32.gmra.mxu0 %v1280
  %v1344 = vpop.f32.mrf.mxu0
  %v1345 = vadd.f32 %v1237, %v1344
  %1346 = vmatmul.f32.gmra.mxu0 %v1283
  %v1347 = vpop.f32.mrf.mxu0
  %v1348 = vadd.f32 %v1237, %v1347
  %1349 = vmatmul.f32.gmra.mxu0 %v1286
  %v1350 = vpop.f32.mrf.mxu0
  %v1351 = vadd.f32 %v1237, %v1350
  %1352 = vdwg.mxu0
  %v1353 = vld [vmem:[%s1] sm:$0xff]
  %v1354 = vld [vmem:[%s1 + $0x8] sm:$0xff]
  %v1355 = vld [vmem:[%s1 + $0x10] sm:$0xff]
  %v1356 = vld [vmem:[%s1 + $0x18] sm:$0xff]
  %v1357 = vld [vmem:[%s1 + $0x20] sm:$0xff]
  %v1358 = vld [vmem:[%s1 + $0x28] sm:$0xff]
  %v1359 = vld [vmem:[%s1 + $0x30] sm:$0xff]
  %v1360 = vld [vmem:[%s1 + $0x38] sm:$0xff]
  %v1361 = vld [vmem:[%s1 + $0x40] sm:$0xff]
  %v1362 = vld [vmem:[%s1 + $0x48] sm:$0xff]
  %v1363 = vld [vmem:[%s1 + $0x50] sm:$0xff]
  %v1364 = vld [vmem:[%s1 + $0x58] sm:$0xff]
  %v1365 = vld [vmem:[%s1 + $0x60] sm:$0xff]
  %v1366 = vld [vmem:[%s1 + $0x68] sm:$0xff]
  %v1367 = vld [vmem:[%s1 + $0x70] sm:$0xff]
  %v1368 = vld [vmem:[%s1 + $0x78] sm:$0xff]
  %v1369 = vld [vmem:[%s6] sm:$0xf]
  %v1370 = vld [vmem:[%s7] sm:$0x1]
  %v1372 = vperm.slane %v1370, 0
  %vm1374 = vcmask 31744
  %v1376 = vsel %vm1374, %v1353, 0
  %v1379 = vsel %vm1374, %v1354, 0
  %v1382 = vsel %vm1374, %v1355, 0
  %v1385 = vsel %vm1374, %v1356, 0
  %v1388 = vsel %vm1374, %v1357, 0
  %v1391 = vsel %vm1374, %v1358, 0
  %v1394 = vsel %vm1374, %v1359, 0
  %v1397 = vsel %vm1374, %v1360, 0
  %v1400 = vsel %vm1374, %v1361, 0
  %v1403 = vsel %vm1374, %v1362, 0
  %v1406 = vsel %vm1374, %v1363, 0
  %v1409 = vsel %vm1374, %v1364, 0
  %v1412 = vsel %vm1374, %v1365, 0
  %v1415 = vsel %vm1374, %v1366, 0
  %v1418 = vsel %vm1374, %v1367, 0
  %v1421 = vsel %vm1374, %v1368, 0
  %v1424 = vsel %vm115, %v1369, 0
  %1426 = vmatpush.msra.mxu0 0.0
  %1427 = vmatpush.msra.mxu0 0.0
  %1428 = vmatpush.msra.mxu0 0.0
  %1429 = vmatpush.msra.mxu0 0.0
  %1430 = vmatpush.msra.mxu0 0.0
  %1431 = vmatpush.msra.mxu0 0.0
  %1432 = vmatpush.msra.mxu0 0.0
  %1433 = vmatpush.msra.mxu0 0.0
  %1434 = vmatpush.msra.mxu0 0.0
  %1435 = vmatpush.msra.mxu0 0.0
  %1436 = vmatpush.msra.mxu0 0.0
  %1437 = vmatpush.msra.mxu0 0.0
  %1438 = vmatpush.msra.mxu0 0.0
  %1439 = vmatpush.msra.mxu0 0.0
  %1440 = vmatpush.msra.mxu0 0.0
  %1441 = vmatpush.msra.mxu0 %v1424
  %1442 = vmatmul.f32.gmra.mxu0 %v1376
  %v1443 = vpop.f32.mrf.mxu0
  %v1444 = vadd.f32 %v1372, %v1443
  %1445 = vmatmul.f32.gmra.mxu0 %v1379
  %v1446 = vpop.f32.mrf.mxu0
  %v1447 = vadd.f32 %v1372, %v1446
  %1448 = vmatmul.f32.gmra.mxu0 %v1382
  %v1449 = vpop.f32.mrf.mxu0
  %v1450 = vadd.f32 %v1372, %v1449
  %1451 = vmatmul.f32.gmra.mxu0 %v1385
  %v1452 = vpop.f32.mrf.mxu0
  %v1453 = vadd.f32 %v1372, %v1452
  %1454 = vmatmul.f32.gmra.mxu0 %v1388
  %v1455 = vpop.f32.mrf.mxu0
  %v1456 = vadd.f32 %v1372, %v1455
  %1457 = vmatmul.f32.gmra.mxu0 %v1391
  %v1458 = vpop.f32.mrf.mxu0
  %v1459 = vadd.f32 %v1372, %v1458
  %1460 = vmatmul.f32.gmra.mxu0 %v1394
  %v1461 = vpop.f32.mrf.mxu0
  %v1462 = vadd.f32 %v1372, %v1461
  %1463 = vmatmul.f32.gmra.mxu0 %v1397
  %v1464 = vpop.f32.mrf.mxu0
  %v1465 = vadd.f32 %v1372, %v1464
  %1466 = vmatmul.f32.gmra.mxu0 %v1400
  %v1467 = vpop.f32.mrf.mxu0
  %v1468 = vadd.f32 %v1372, %v1467
  %1469 = vmatmul.f32.gmra.mxu0 %v1403
  %v1470 = vpop.f32.mrf.mxu0
  %v1471 = vadd.f32 %v1372, %v1470
  %1472 = vmatmul.f32.gmra.mxu0 %v1406
  %v1473 = vpop.f32.mrf.mxu0
  %v1474 = vadd.f32 %v1372, %v1473
  %1475 = vmatmul.f32.gmra.mxu0 %v1409
  %v1476 = vpop.f32.mrf.mxu0
  %v1477 = vadd.f32 %v1372, %v1476
  %1478 = vmatmul.f32.gmra.mxu0 %v1412
  %v1479 = vpop.f32.mrf.mxu0
  %v1480 = vadd.f32 %v1372, %v1479
  %1481 = vmatmul.f32.gmra.mxu0 %v1415
  %v1482 = vpop.f32.mrf.mxu0
  %v1483 = vadd.f32 %v1372, %v1482
  %1484 = vmatmul.f32.gmra.mxu0 %v1418
  %v1485 = vpop.f32.mrf.mxu0
  %v1486 = vadd.f32 %v1372, %v1485
  %1487 = vmatmul.f32.gmra.mxu0 %v1421
  %v1488 = vpop.f32.mrf.mxu0
  %v1489 = vadd.f32 %v1372, %v1488
  %1490 = vdwg.mxu0
  %v1491 = vld [vmem:[%s10] sm:$0x1]
  %v1492 = vld [vmem:[%s11] sm:$0x1]
  %v1493 = vsel %vm186, %v1306, 0.0
  %v1494 = vsel %vm186, %v1309, 0.0
  %v1495 = vadd.f32 %v1493, %v1494
  %v1496 = vsel %vm186, %v1312, 0.0
  %v1497 = vadd.f32 %v1495, %v1496
  %v1498 = vsel %vm186, %v1315, 0.0
  %v1499 = vadd.f32 %v1497, %v1498
  %v1500 = vsel %vm186, %v1318, 0.0
  %v1501 = vadd.f32 %v1499, %v1500
  %v1502 = vsel %vm186, %v1321, 0.0
  %v1503 = vadd.f32 %v1501, %v1502
  %v1504 = vsel %vm186, %v1324, 0.0
  %v1505 = vadd.f32 %v1503, %v1504
  %v1506 = vsel %vm186, %v1327, 0.0
  %v1507 = vadd.f32 %v1505, %v1506
  %v1508 = vsel %vm186, %v1330, 0.0
  %v1509 = vadd.f32 %v1507, %v1508
  %v1510 = vsel %vm186, %v1333, 0.0
  %v1511 = vadd.f32 %v1509, %v1510
  %v1512 = vsel %vm186, %v1336, 0.0
  %v1513 = vadd.f32 %v1511, %v1512
  %v1514 = vsel %vm186, %v1339, 0.0
  %v1515 = vadd.f32 %v1513, %v1514
  %v1516 = vsel %vm186, %v1342, 0.0
  %v1517 = vadd.f32 %v1515, %v1516
  %v1518 = vsel %vm186, %v1345, 0.0
  %v1519 = vadd.f32 %v1517, %v1518
  %v1520 = vsel %vm186, %v1348, 0.0
  %v1521 = vadd.f32 %v1519, %v1520
  %v1522 = vsel %vm186, %v1351, 0.0
  %v1523 = vadd.f32 %v1521, %v1522
  %v1524 = vrot.slane %v1523, 4
  %v1525 = vadd.f32 %v1523, %v1524
  %v1526 = vrot.slane %v1525, 2
  %v1527 = vadd.f32 %v1525, %v1526
  %v1528 = vrot.slane %v1527, 1
  %v1529 = vadd.f32 %v1527, %v1528
  %v1530 = vmul.f32 %v1529, 0.0078125
  %v1531 = vsub.f32 %v1306, %v1530
  %v1532 = vsub.f32 %v1309, %v1530
  %v1533 = vsub.f32 %v1312, %v1530
  %v1534 = vsub.f32 %v1315, %v1530
  %v1535 = vsub.f32 %v1318, %v1530
  %v1536 = vsub.f32 %v1321, %v1530
  %v1537 = vsub.f32 %v1324, %v1530
  %v1538 = vsub.f32 %v1327, %v1530
  %v1539 = vsub.f32 %v1330, %v1530
  %v1540 = vsub.f32 %v1333, %v1530
  %v1541 = vsub.f32 %v1336, %v1530
  %v1542 = vsub.f32 %v1339, %v1530
  %v1543 = vsub.f32 %v1342, %v1530
  %v1544 = vsub.f32 %v1345, %v1530
  %v1545 = vsub.f32 %v1348, %v1530
  %v1546 = vsub.f32 %v1351, %v1530
  %v1547 = vmul.f32 %v1531, %v1531
  %v1548 = vmul.f32 %v1532, %v1532
  %v1549 = vmul.f32 %v1533, %v1533
  %v1550 = vmul.f32 %v1534, %v1534
  %v1551 = vmul.f32 %v1535, %v1535
  %v1552 = vmul.f32 %v1536, %v1536
  %v1553 = vmul.f32 %v1537, %v1537
  %v1554 = vmul.f32 %v1538, %v1538
  %v1555 = vmul.f32 %v1539, %v1539
  %v1556 = vmul.f32 %v1540, %v1540
  %v1557 = vmul.f32 %v1541, %v1541
  %v1558 = vmul.f32 %v1542, %v1542
  %v1559 = vmul.f32 %v1543, %v1543
  %v1560 = vmul.f32 %v1544, %v1544
  %v1561 = vmul.f32 %v1545, %v1545
  %v1562 = vmul.f32 %v1546, %v1546
  %v1563 = vsel %vm186, %v1547, 0.0
  %v1564 = vsel %vm186, %v1548, 0.0
  %v1565 = vadd.f32 %v1563, %v1564
  %v1566 = vsel %vm186, %v1549, 0.0
  %v1567 = vadd.f32 %v1565, %v1566
  %v1568 = vsel %vm186, %v1550, 0.0
  %v1569 = vadd.f32 %v1567, %v1568
  %v1570 = vsel %vm186, %v1551, 0.0
  %v1571 = vadd.f32 %v1569, %v1570
  %v1572 = vsel %vm186, %v1552, 0.0
  %v1573 = vadd.f32 %v1571, %v1572
  %v1574 = vsel %vm186, %v1553, 0.0
  %v1575 = vadd.f32 %v1573, %v1574
  %v1576 = vsel %vm186, %v1554, 0.0
  %v1577 = vadd.f32 %v1575, %v1576
  %v1578 = vsel %vm186, %v1555, 0.0
  %v1579 = vadd.f32 %v1577, %v1578
  %v1580 = vsel %vm186, %v1556, 0.0
  %v1581 = vadd.f32 %v1579, %v1580
  %v1582 = vsel %vm186, %v1557, 0.0
  %v1583 = vadd.f32 %v1581, %v1582
  %v1584 = vsel %vm186, %v1558, 0.0
  %v1585 = vadd.f32 %v1583, %v1584
  %v1586 = vsel %vm186, %v1559, 0.0
  %v1587 = vadd.f32 %v1585, %v1586
  %v1588 = vsel %vm186, %v1560, 0.0
  %v1589 = vadd.f32 %v1587, %v1588
  %v1590 = vsel %vm186, %v1561, 0.0
  %v1591 = vadd.f32 %v1589, %v1590
  %v1592 = vsel %vm186, %v1562, 0.0
  %v1593 = vadd.f32 %v1591, %v1592
  %v1594 = vrot.slane %v1593, 4
  %v1595 = vadd.f32 %v1593, %v1594
  %v1596 = vrot.slane %v1595, 2
  %v1597 = vadd.f32 %v1595, %v1596
  %v1598 = vrot.slane %v1597, 1
  %v1599 = vadd.f32 %v1597, %v1598
  %v1600 = vmul.f32 %v1599, 0.0078125
  %v1601 = vadd.f32 %v1600, 1e-05
  %v1602 = vrsqrt.pop %v1601
  %v1603 = vmul.f32 %v1602, %v1601
  %v1604 = vmul.f32 %v1603, %v1602
  %v1605 = vmul.f32 0.5, %v1604
  %v1606 = vsub.f32 1.5, %v1605
  %v1607 = vmul.f32 %v1602, %v1606
  %vm1608 = vweird.f32 %v1601
  %vm1609 = vweird.f32 %v1602
  %vm1610 = vmor %vm1608, %vm1609
  %v1611 = vsel %vm1610, %v1602, %v1607
  %v1612 = vmul.f32 %v1531, %v1611
  %v1613 = vmul.f32 %v1532, %v1611
  %v1614 = vmul.f32 %v1533, %v1611
  %v1615 = vmul.f32 %v1534, %v1611
  %v1616 = vmul.f32 %v1535, %v1611
  %v1617 = vmul.f32 %v1536, %v1611
  %v1618 = vmul.f32 %v1537, %v1611
  %v1619 = vmul.f32 %v1538, %v1611
  %v1620 = vmul.f32 %v1539, %v1611
  %v1621 = vmul.f32 %v1540, %v1611
  %v1622 = vmul.f32 %v1541, %v1611
  %v1623 = vmul.f32 %v1542, %v1611
  %v1624 = vmul.f32 %v1543, %v1611
  %v1625 = vmul.f32 %v1544, %v1611
  %v1626 = vmul.f32 %v1545, %v1611
  %v1627 = vmul.f32 %v1546, %v1611
  %v1629 = vperm.slane %v1491, 0
  %v1631 = vmul.f32 %v1612, %v1629
  %v1632 = vmul.f32 %v1613, %v1629
  %v1633 = vmul.f32 %v1614, %v1629
  %v1634 = vmul.f32 %v1615, %v1629
  %v1635 = vmul.f32 %v1616, %v1629
  %v1636 = vmul.f32 %v1617, %v1629
  %v1637 = vmul.f32 %v1618, %v1629
  %v1638 = vmul.f32 %v1619, %v1629
  %v1639 = vmul.f32 %v1620, %v1629
  %v1640 = vmul.f32 %v1621, %v1629
  %v1641 = vmul.f32 %v1622, %v1629
  %v1642 = vmul.f32 %v1623, %v1629
  %v1643 = vmul.f32 %v1624, %v1629
  %v1644 = vmul.f32 %v1625, %v1629
  %v1645 = vmul.f32 %v1626, %v1629
  %v1646 = vmul.f32 %v1627, %v1629
  %v1648 = vperm.slane %v1492, 0
  %v1650 = vadd.f32 %v1631, %v1648
  %v1651 = vadd.f32 %v1632, %v1648
  %v1652 = vadd.f32 %v1633, %v1648
  %v1653 = vadd.f32 %v1634, %v1648
  %v1654 = vadd.f32 %v1635, %v1648
  %v1655 = vadd.f32 %v1636, %v1648
  %v1656 = vadd.f32 %v1637, %v1648
  %v1657 = vadd.f32 %v1638, %v1648
  %v1658 = vadd.f32 %v1639, %v1648
  %v1659 = vadd.f32 %v1640, %v1648
  %v1660 = vadd.f32 %v1641, %v1648
  %v1661 = vadd.f32 %v1642, %v1648
  %v1662 = vadd.f32 %v1643, %v1648
  %v1663 = vadd.f32 %v1644, %v1648
  %v1664 = vadd.f32 %v1645, %v1648
  %v1665 = vadd.f32 %v1646, %v1648
  %v1666 = vadd.f32 %v1650, %v1444
  %v1667 = vadd.f32 %v1651, %v1447
  %v1668 = vadd.f32 %v1652, %v1450
  %v1669 = vadd.f32 %v1653, %v1453
  %v1670 = vadd.f32 %v1654, %v1456
  %v1671 = vadd.f32 %v1655, %v1459
  %v1672 = vadd.f32 %v1656, %v1462
  %v1673 = vadd.f32 %v1657, %v1465
  %v1674 = vadd.f32 %v1658, %v1468
  %v1675 = vadd.f32 %v1659, %v1471
  %v1676 = vadd.f32 %v1660, %v1474
  %v1677 = vadd.f32 %v1661, %v1477
  %v1678 = vadd.f32 %v1662, %v1480
  %v1679 = vadd.f32 %v1663, %v1483
  %v1680 = vadd.f32 %v1664, %v1486
  %v1681 = vadd.f32 %v1665, %v1489
  %v1682 = vmax.f32 %v1666, 0.0
  %v1683 = vmax.f32 %v1667, 0.0
  %v1684 = vmax.f32 %v1668, 0.0
  %v1685 = vmax.f32 %v1669, 0.0
  %v1686 = vmax.f32 %v1670, 0.0
  %v1687 = vmax.f32 %v1671, 0.0
  %v1688 = vmax.f32 %v1672, 0.0
  %v1689 = vmax.f32 %v1673, 0.0
  %v1690 = vmax.f32 %v1674, 0.0
  %v1691 = vmax.f32 %v1675, 0.0
  %v1692 = vmax.f32 %v1676, 0.0
  %v1693 = vmax.f32 %v1677, 0.0
  %v1694 = vmax.f32 %v1678, 0.0
  %v1695 = vmax.f32 %v1679, 0.0
  %v1696 = vmax.f32 %v1680, 0.0
  %v1697 = vmax.f32 %v1681, 0.0
  %1698 = vst.msk [vmem:[%s12] sm:$0xff] %vm186, %v1682
  %1699 = vst.msk [vmem:[%s12 + $0x8] sm:$0xff] %vm186, %v1683
  %1700 = vst.msk [vmem:[%s12 + $0x10] sm:$0xff] %vm186, %v1684
  %1701 = vst.msk [vmem:[%s12 + $0x18] sm:$0xff] %vm186, %v1685
  %1702 = vst.msk [vmem:[%s12 + $0x20] sm:$0xff] %vm186, %v1686
  %1703 = vst.msk [vmem:[%s12 + $0x28] sm:$0xff] %vm186, %v1687
  %1704 = vst.msk [vmem:[%s12 + $0x30] sm:$0xff] %vm186, %v1688
  %1705 = vst.msk [vmem:[%s12 + $0x38] sm:$0xff] %vm186, %v1689
  %1706 = vst.msk [vmem:[%s12 + $0x40] sm:$0xff] %vm186, %v1690
  %1707 = vst.msk [vmem:[%s12 + $0x48] sm:$0xff] %vm186, %v1691
  %1708 = vst.msk [vmem:[%s12 + $0x50] sm:$0xff] %vm186, %v1692
  %1709 = vst.msk [vmem:[%s12 + $0x58] sm:$0xff] %vm186, %v1693
  %1710 = vst.msk [vmem:[%s12 + $0x60] sm:$0xff] %vm186, %v1694
  %1711 = vst.msk [vmem:[%s12 + $0x68] sm:$0xff] %vm186, %v1695
  %1712 = vst.msk [vmem:[%s12 + $0x70] sm:$0xff] %vm186, %v1696
  %1713 = vst.msk [vmem:[%s12 + $0x78] sm:$0xff] %vm186, %v1697
  // Predicated region
  $region50: #{residual_forward.1} parent=0 // pred_check
    _
  $region51: #{residual_forward.1} parent=0 // pred_check_branch
    %1715 = sbr.rel (0) target = $region53
  $region52: #{residual_forward.1} parent=0 // pred_region
    _
  $region53: #{residual_forward.1} parent=0 // pred_fallthru
    _
  // Predicated region
  $region54: #{residual_forward.1} parent=0 // pred_check
    _
  $region55: #{residual_forward.1} parent=0 // pred_check_branch
    %1717 = sbr.rel (0) target = $region57
  $region56: #{residual_forward.1} parent=0 // pred_region
    _
  $region57: #{residual_forward.1} parent=0 // pred_fallthru
    _

</llo_original>
